<compile_context>
chip_gen: v5e
topology: v5e:2x2
jax: 0.10.0
libtpu: 0.0.40
codegen_flags: <defaults>
</compile_context>

<pallas_src>
import functools
from typing import NamedTuple

import numpy as np

import jax
import jax.numpy as jnp
from jax import lax
from jax.experimental import pallas as pl
from jax.experimental.pallas import tpu as pltpu


# ----------------------------------------------------------------------------
# Static shape configuration (all Python ints -> hashable, jit-static)
# ----------------------------------------------------------------------------
class Cfg(NamedTuple):
    Cin: int
    Hs: int     # H // 2   (space-to-depth height)
    Ws: int     # W // 2   (space-to-depth width)
    Din: int    # 4 * Cin  (space-to-depth channels)
    KH1: int
    OH1: int
    OW1: int
    C1: int
    P1: int
    Q1: int
    KH2: int
    OH2: int
    OW2: int
    C2: int
    P2: int
    Q2: int
    A: int


_WKEYS = ("w1b", "b1t", "w2b", "b2t", "wv", "bv",
          "wf1_img", "wf1_vel", "bf1", "wf2", "bf2")

_MAX_BATCH_TILE = 8   # images processed per grid step


# ----------------------------------------------------------------------------
# Fused Pallas kernel
# ----------------------------------------------------------------------------
def _maxpool2x2_packed(y, p_out, q_out, c):
    """2x2/stride-2 max-pool on a (H, W*C) channel-packed 2-D value.

    Trailing odd row / column is dropped (PyTorch MaxPool2d floor behaviour).
    Returns (p_out, q_out * c).
    """
    rows = [jnp.maximum(y[2 * p:2 * p + 1, :], y[2 * p + 1:2 * p + 2, :])
            for p in range(p_out)]
    r = jnp.concatenate(rows, axis=0)                                # (p_out, W*C)
    even = jnp.concatenate([r[:, (2 * q) * c:(2 * q + 1) * c]
                            for q in range(q_out)], axis=1)
    odd = jnp.concatenate([r[:, (2 * q + 1) * c:(2 * q + 2) * c]
                           for q in range(q_out)], axis=1)
    return jnp.maximum(even, odd)                                    # (p_out, q_out*c)


def _dqn_fused_kernel(xs_ref, vel_ref, w1_ref, b1_ref, w2_ref, b2_ref,
                      wv_ref, bv_ref, wf1i_ref, wf1v_ref, bf1_ref,
                      wf2_ref, bf2_ref, out_ref, *, cfg, bt):
    f32 = jnp.float32

    # ---- per-image conv tower (static unroll over the batch tile) ----
    flats = []
    for b in range(bt):
        xs = xs_ref[b]                                # (Hs, Ws*Din), channel-packed

        # conv1 (6x6 stride 2, folded to 3x3 stride 1 via space-to-depth)
        y1 = jnp.dot(xs[0:cfg.OH1, :], w1_ref[0], preferred_element_type=f32)
        for ii in range(1, cfg.KH1):
            y1 = y1 + jnp.dot(xs[ii:ii + cfg.OH1, :], w1_ref[ii],
                              preferred_element_type=f32)
        y1 = jnp.maximum(y1 + b1_ref[...], 0.0)       # (OH1, OW1*C1)
        p1 = _maxpool2x2_packed(y1, cfg.P1, cfg.Q1, cfg.C1)   # (P1, Q1*C1)

        # conv2 (3x3 stride 1) + ReLU + pool
        y2 = jnp.dot(p1[0:cfg.OH2, :], w2_ref[0], preferred_element_type=f32)
        for ii in range(1, cfg.KH2):
            y2 = y2 + jnp.dot(p1[ii:ii + cfg.OH2, :], w2_ref[ii],
                              preferred_element_type=f32)
        y2 = jnp.maximum(y2 + b2_ref[...], 0.0)       # (OH2, OW2*C2)
        p2 = _maxpool2x2_packed(y2, cfg.P2, cfg.Q2, cfg.C2)   # (P2, Q2*C2)

        # flatten in (p, q, c) order along lanes -> (1, conv_out)
        flats.append(jnp.concatenate([p2[p:p + 1, :] for p in range(cfg.P2)],
                                     axis=1))
    flat = jnp.concatenate(flats, axis=0)             # (bt, conv_out)

    # ---- velocity branch: Linear(3, 16) + ReLU (batched over the tile) ----
    v = jnp.maximum(jnp.dot(vel_ref[...], wv_ref[...],
                            preferred_element_type=f32) + bv_ref[...], 0.0)

    # ---- head: flatten/concat folded into split + row-permuted wf1 ----
    h = (jnp.dot(flat, wf1i_ref[...], preferred_element_type=f32)
         + jnp.dot(v, wf1v_ref[...], preferred_element_type=f32)
         + bf1_ref[...])
    h = jnp.maximum(h, 0.0)                           # (bt, 16)
    out = jnp.dot(h, wf2_ref[...], preferred_element_type=f32) + bf2_ref[...]
    out_ref[...] = out.astype(out_ref.dtype)          # (bt, A)


def _const_spec(shape):
    zeros = (0,) * len(shape)
    return pl.BlockSpec(shape, lambda i, _z=zeros: _z)


@functools.partial(jax.jit, static_argnames=("cfg",))
def dqn_forward(image_nchw, velocity, weights, cfg):
    """image_nchw: (N, Cin, H, W) f32;  velocity: (N, 3) f32  ->  (N, A) f32."""
    N = image_nchw.shape[0]
    bt = min(_MAX_BATCH_TILE, N)
    n_pad = pl.cdiv(N, bt) * bt

    # Input layout prep (single cheap pass over the small raw input):
    # NCHW -> NHWC -> space-to-depth -> (N, Hs, Ws*Din) channel-packed.
    x = jnp.transpose(image_nchw, (0, 2, 3, 1))
    x = x.reshape(N, cfg.Hs, 2, cfg.Ws, 2, cfg.Cin)
    x = jnp.transpose(x, (0, 1, 3, 2, 4, 5))
    xs = x.reshape(N, cfg.Hs, cfg.Ws * cfg.Din)
    vel = velocity.astype(jnp.float32)
    if n_pad != N:
        xs = jnp.pad(xs, ((0, n_pad - N), (0, 0), (0, 0)))
        vel = jnp.pad(vel, ((0, n_pad - N), (0, 0)))

    w_list = [weights[k] for k in _WKEYS]
    in_specs = [
        pl.BlockSpec((bt, cfg.Hs, cfg.Ws * cfg.Din), lambda i: (i, 0, 0)),
        pl.BlockSpec((bt, 3), lambda i: (i, 0)),
    ] + [_const_spec(w.shape) for w in w_list]

    out = pl.pallas_call(
        functools.partial(_dqn_fused_kernel, cfg=cfg, bt=bt),
        grid=(n_pad // bt,),
        in_specs=in_specs,
        out_specs=pl.BlockSpec((bt, cfg.A), lambda i: (i, 0)),
        out_shape=jax.ShapeDtypeStruct((n_pad, cfg.A), jnp.float32),
        compiler_params=pltpu.CompilerParams(dimension_semantics=("parallel",)),
    )(xs, vel, *w_list)
    return out[:N]


# ----------------------------------------------------------------------------
# One-time weight preparation (pure layout work, paid offline)
# ----------------------------------------------------------------------------
def _banded(w_ii, win, ow):
    """Banded (block-Toeplitz) matrix so a stride-1 conv row becomes one matmul.

    w_ii: (kw, D, Co).  Returns (win*D, ow*Co) with
      M[(o+jj)*D + d, o*Co + c] = w_ii[jj, d, c].
    """
    kw, d, co = w_ii.shape
    m = np.zeros((win * d, ow * co), np.float32)
    for jj in range(kw):
        for o in range(ow):
            m[(o + jj) * d:(o + jj + 1) * d, o * co:(o + 1) * co] = w_ii[jj]
    return m


def prepare_params(params, image_input_dims, num_actions):
    cin, H, W = image_input_dims
    assert H % 2 == 0 and W % 2 == 0, "space-to-depth fold needs even H, W"

    Hs, Ws, Din = H // 2, W // 2, 4 * cin
    KH1 = 3                                     # 6x6/stride2 -> 3x3/stride1 on s2d input
    OH1, OW1, C1 = Hs - KH1 + 1, Ws - KH1 + 1, 16
    P1, Q1 = OH1 // 2, OW1 // 2
    KH2 = 3
    OH2, OW2, C2 = P1 - KH2 + 1, Q1 - KH2 + 1, 32
    P2, Q2 = OH2 // 2, OW2 // 2
    conv_out = C2 * P2 * Q2

    # conv1 weight: (6,6,cin,16) HWIO -> space-to-depth kernel (3,3,4*cin,16)
    w1 = np.asarray(params["w1"], np.float32)
    w1s = w1.reshape(KH1, 2, KH1, 2, cin, C1).transpose(0, 2, 1, 3, 4, 5)
    w1s = w1s.reshape(KH1, KH1, Din, C1)
    w1b = np.stack([_banded(w1s[ii], Ws, OW1) for ii in range(KH1)])     # (3, Ws*Din, OW1*C1)

    w2 = np.asarray(params["w2"], np.float32)                            # (3,3,16,32) HWIO
    w2b = np.stack([_banded(w2[ii], Q1, OW2) for ii in range(KH2)])      # (3, Q1*C1, OW2*C2)

    b1t = np.tile(np.asarray(params["b1"], np.float32), OW1)[None, :]    # (1, OW1*C1)
    b2t = np.tile(np.asarray(params["b2"], np.float32), OW2)[None, :]    # (1, OW2*C2)

    # Head weight: split image/velocity halves and bake the NCHW-flatten
    # permutation into the image half so the kernel consumes the packed
    # (p, q, c) flatten directly (no transpose / concat at runtime).
    wf1 = np.asarray(params["wf1"], np.float32)                          # (conv_out+16, 16)
    old_idx = np.empty(conv_out, np.int64)
    r = 0
    for p in range(P2):
        for q in range(Q2):
            for c in range(C2):
                old_idx[r] = c * (P2 * Q2) + p * Q2 + q
                r += 1
    wf1_img = wf1[:conv_out][old_idx]                                    # (conv_out, 16)
    wf1_vel = wf1[conv_out:]                                             # (16, 16)

    weights = {
        "w1b": jnp.asarray(w1b), "b1t": jnp.asarray(b1t),
        "w2b": jnp.asarray(w2b), "b2t": jnp.asarray(b2t),
        "wv": jnp.asarray(params["wv"], dtype=jnp.float32),
        "bv": jnp.asarray(params["bv"], dtype=jnp.float32).reshape(1, -1),
        "wf1_img": jnp.asarray(wf1_img), "wf1_vel": jnp.asarray(wf1_vel),
        "bf1": jnp.asarray(params["bf1"], dtype=jnp.float32).reshape(1, -1),
        "wf2": jnp.asarray(params["wf2"], dtype=jnp.float32),
        "bf2": jnp.asarray(params["bf2"], dtype=jnp.float32).reshape(1, -1),
    }
    cfg = Cfg(Cin=cin, Hs=Hs, Ws=Ws, Din=Din,
              KH1=KH1, OH1=OH1, OW1=OW1, C1=C1, P1=P1, Q1=Q1,
              KH2=KH2, OH2=OH2, OW2=OW2, C2=C2, P2=P2, Q2=Q2,
              A=num_actions)
    return weights, cfg


# ----------------------------------------------------------------------------
# Pure-JAX reference (PyTorch semantics) for correctness check
# ----------------------------------------------------------------------------
def reference_forward(image_nchw, velocity, params):
    dn = ("NCHW", "HWIO", "NCHW")

    def pool(z):
        return lax.reduce_window(z, -jnp.inf, lax.max,
                                 (1, 1, 2, 2), (1, 1, 2, 2), "VALID")

    x = lax.conv_general_dilated(image_nchw, params["w1"], (2, 2), "VALID",
                                 dimension_numbers=dn)
    x = jnp.maximum(x + params["b1"].reshape(1, -1, 1, 1), 0.0)
    x = pool(x)
    x = lax.conv_general_dilated(x, params["w2"], (1, 1), "VALID",
                                 dimension_numbers=dn)
    x = jnp.maximum(x + params["b2"].reshape(1, -1, 1, 1), 0.0)
    x = pool(x)
    flat = x.reshape(x.shape[0], -1)                       # NCHW flatten (c,h,w)
    v = jnp.maximum(velocity @ params["wv"] + params["bv"], 0.0)
    cat = jnp.concatenate([flat, v], axis=1)
    h = jnp.maximum(cat @ params["wf1"] + params["bf1"], 0.0)
    return h @ params["wf2"] + params["bf2"]


# ----------------------------------------------------------------------------
def make_params(key, image_input_dims, num_actions):
    cin, H, W = image_input_dims
    oh1, ow1 = (H - 6) // 2 + 1, (W - 6) // 2 + 1
    ph1, pw1 = oh1 // 2, ow1 // 2
    oh2, ow2 = ph1 - 3 + 1, pw1 - 3 + 1
    ph2, pw2 = oh2 // 2, ow2 // 2
    conv_out = 32 * ph2 * pw2

    ks = jax.random.split(key, 10)

    def init(k, shape, fan_in):
        return jax.random.normal(k, shape, jnp.float32) / jnp.sqrt(fan_in)

    params = {
        "w1": init(ks[0], (6, 6, cin, 16), 6 * 6 * cin),
        "b1": init(ks[1], (16,), 6 * 6 * cin),
        "w2": init(ks[2], (3, 3, 16, 32), 3 * 3 * 16),
        "b2": init(ks[3], (32,), 3 * 3 * 16),
        "wv": init(ks[4], (3, 16), 3),
        "bv": init(ks[5], (16,), 3),
        "wf1": init(ks[6], (conv_out + 16, 16), conv_out + 16),
        "bf1": init(ks[7], (16,), conv_out + 16),
        "wf2": init(ks[8], (16, num_actions), 16),
        "bf2": init(ks[9], (num_actions,), 16),
    }
    return params, conv_out


if __name__ == "__main__":
    num_actions = 4
    image_input_dims = (4, 32, 32)   # (C, H, W)

    key = jax.random.PRNGKey(0)
    kp, ki, kv, ki2, kv2 = jax.random.split(key, 5)
    params, conv_out = make_params(kp, image_input_dims, num_actions)
    weights, cfg = prepare_params(params, image_input_dims, num_actions)

    # Small-batch check (single grid step, batch tile == batch)
    batch = 2
    image = jax.random.normal(ki, (batch, *image_input_dims), jnp.float32)   # NCHW
    velocity = jax.random.normal(kv, (batch, 3), jnp.float32)

    out = dqn_forward(image, velocity, weights, cfg=cfg)
    out = jax.block_until_ready(out)
    assert out.shape == (batch, num_actions)
    ref = reference_forward(image, velocity, params)
    assert jnp.allclose(out, ref, atol=1e-2, rtol=1e-2), (out, ref)

    # Larger-batch check: exercises the 8-image batch tile, padding and the
    # multi-step ("parallel") grid path.
    batch2 = 10
    image2 = jax.random.normal(ki2, (batch2, *image_input_dims), jnp.float32)
    velocity2 = jax.random.normal(kv2, (batch2, 3), jnp.float32)
    out2 = jax.block_until_ready(dqn_forward(image2, velocity2, weights, cfg=cfg))
    ref2 = reference_forward(image2, velocity2, params)
    assert out2.shape == (batch2, num_actions)
    assert jnp.allclose(out2, ref2, atol=1e-2, rtol=1e-2), (out2, ref2)

    print("KERNEL_OK")
</pallas_src>

<mosaic_0001>
module attributes {stable_mosaic.version = 11 : i64} {
  func.func @_dqn_fused_kernel(%arg0: i32, %arg1: memref<2x16x256xf32, #tpu.memory_space<vmem>>, %arg2: memref<2x3xf32, #tpu.memory_space<vmem>>, %arg3: memref<3x256x224xf32, #tpu.memory_space<vmem>>, %arg4: memref<1x224xf32, #tpu.memory_space<vmem>>, %arg5: memref<3x112x160xf32, #tpu.memory_space<vmem>>, %arg6: memref<1x160xf32, #tpu.memory_space<vmem>>, %arg7: memref<3x16xf32, #tpu.memory_space<vmem>>, %arg8: memref<1x16xf32, #tpu.memory_space<vmem>>, %arg9: memref<128x16xf32, #tpu.memory_space<vmem>>, %arg10: memref<16x16xf32, #tpu.memory_space<vmem>>, %arg11: memref<1x16xf32, #tpu.memory_space<vmem>>, %arg12: memref<16x4xf32, #tpu.memory_space<vmem>>, %arg13: memref<1x4xf32, #tpu.memory_space<vmem>>, %arg14: memref<2x4xf32, #tpu.memory_space<vmem>>) attributes {dimension_semantics = [#tpu.dimension_semantics<parallel>], iteration_bounds = array<i64: 1>, scalar_prefetch = 0 : i64, scratch_operands = 0 : i64, tpu.core_type = #tpu.core_type<tc>, window_params = [{transform_indices = @transform_0, window_bounds = array<i64: 2, 16, 256>}, {transform_indices = @transform_1, window_bounds = array<i64: 2, 3>}, {pipeline_mode = #tpu.pipeline_mode<synchronous>, transform_indices = @transform_2, window_bounds = array<i64: 3, 256, 224>}, {pipeline_mode = #tpu.pipeline_mode<synchronous>, transform_indices = @transform_3, window_bounds = array<i64: 1, 224>}, {pipeline_mode = #tpu.pipeline_mode<synchronous>, transform_indices = @transform_4, window_bounds = array<i64: 3, 112, 160>}, {pipeline_mode = #tpu.pipeline_mode<synchronous>, transform_indices = @transform_5, window_bounds = array<i64: 1, 160>}, {pipeline_mode = #tpu.pipeline_mode<synchronous>, transform_indices = @transform_6, window_bounds = array<i64: 3, 16>}, {pipeline_mode = #tpu.pipeline_mode<synchronous>, transform_indices = @transform_7, window_bounds = array<i64: 1, 16>}, {pipeline_mode = #tpu.pipeline_mode<synchronous>, transform_indices = @transform_8, window_bounds = array<i64: 128, 16>}, {pipeline_mode = #tpu.pipeline_mode<synchronous>, transform_indices = @transform_9, window_bounds = array<i64: 16, 16>}, {pipeline_mode = #tpu.pipeline_mode<synchronous>, transform_indices = @transform_10, window_bounds = array<i64: 1, 16>}, {pipeline_mode = #tpu.pipeline_mode<synchronous>, transform_indices = @transform_11, window_bounds = array<i64: 16, 4>}, {pipeline_mode = #tpu.pipeline_mode<synchronous>, transform_indices = @transform_12, window_bounds = array<i64: 1, 4>}, {transform_indices = @transform_13, window_bounds = array<i64: 2, 4>}]} {
    %c0 = arith.constant 0 : index
    %c0_0 = arith.constant 0 : index
    %c0_1 = arith.constant 0 : index
    %0 = vector.load %arg1[%c0, %c0_0, %c0_1] : memref<2x16x256xf32, #tpu.memory_space<vmem>>, vector<1x16x256xf32>
    %1 = vector.shape_cast %0 : vector<1x16x256xf32> to vector<16x256xf32>
    %2 = vector.extract_strided_slice %1 {offsets = [0, 0], sizes = [14, 256], strides = [1, 1]} : vector<16x256xf32> to vector<14x256xf32>
    %c0_2 = arith.constant 0 : index
    %c0_3 = arith.constant 0 : index
    %c0_4 = arith.constant 0 : index
    %3 = vector.load %arg3[%c0_2, %c0_3, %c0_4] : memref<3x256x224xf32, #tpu.memory_space<vmem>>, vector<1x256x224xf32>
    %4 = vector.shape_cast %3 : vector<1x256x224xf32> to vector<256x224xf32>
    %cst = arith.constant dense<0.000000e+00> : vector<14x224xf32>
    %5 = tpu.matmul %2, %4, %cst {dimension_numbers = #tpu.dot_dimension_numbers<[1], [0], [0], [1], [0, 0, 1, 1], [], []>} : vector<14x256xf32>, vector<256x224xf32>, vector<14x224xf32> -> vector<14x224xf32>
    %6 = vector.extract_strided_slice %1 {offsets = [1, 0], sizes = [14, 256], strides = [1, 1]} : vector<16x256xf32> to vector<14x256xf32>
    %c1 = arith.constant 1 : index
    %c0_5 = arith.constant 0 : index
    %c0_6 = arith.constant 0 : index
    %7 = vector.load %arg3[%c1, %c0_5, %c0_6] : memref<3x256x224xf32, #tpu.memory_space<vmem>>, vector<1x256x224xf32>
    %8 = vector.shape_cast %7 : vector<1x256x224xf32> to vector<256x224xf32>
    %cst_7 = arith.constant dense<0.000000e+00> : vector<14x224xf32>
    %9 = tpu.matmul %6, %8, %cst_7 {dimension_numbers = #tpu.dot_dimension_numbers<[1], [0], [0], [1], [0, 0, 1, 1], [], []>} : vector<14x256xf32>, vector<256x224xf32>, vector<14x224xf32> -> vector<14x224xf32>
    %10 = arith.addf %5, %9 : vector<14x224xf32>
    %11 = vector.extract_strided_slice %1 {offsets = [2, 0], sizes = [14, 256], strides = [1, 1]} : vector<16x256xf32> to vector<14x256xf32>
    %c2 = arith.constant 2 : index
    %c0_8 = arith.constant 0 : index
    %c0_9 = arith.constant 0 : index
    %12 = vector.load %arg3[%c2, %c0_8, %c0_9] : memref<3x256x224xf32, #tpu.memory_space<vmem>>, vector<1x256x224xf32>
    %13 = vector.shape_cast %12 : vector<1x256x224xf32> to vector<256x224xf32>
    %cst_10 = arith.constant dense<0.000000e+00> : vector<14x224xf32>
    %14 = tpu.matmul %11, %13, %cst_10 {dimension_numbers = #tpu.dot_dimension_numbers<[1], [0], [0], [1], [0, 0, 1, 1], [], []>} : vector<14x256xf32>, vector<256x224xf32>, vector<14x224xf32> -> vector<14x224xf32>
    %15 = arith.addf %10, %14 : vector<14x224xf32>
    %c0_11 = arith.constant 0 : index
    %c0_12 = arith.constant 0 : index
    %16 = vector.load %arg4[%c0_11, %c0_12] : memref<1x224xf32, #tpu.memory_space<vmem>>, vector<1x224xf32>
    %17 = vector.broadcast %16 : vector<1x224xf32> to vector<14x224xf32>
    %18 = arith.addf %15, %17 : vector<14x224xf32>
    %cst_13 = arith.constant 0.000000e+00 : f32
    %19 = vector.broadcast %cst_13 : f32 to vector<14x224xf32>
    %20 = arith.maximumf %18, %19 : vector<14x224xf32>
    %21 = vector.extract_strided_slice %20 {offsets = [0, 0], sizes = [1, 224], strides = [1, 1]} : vector<14x224xf32> to vector<1x224xf32>
    %22 = vector.extract_strided_slice %20 {offsets = [1, 0], sizes = [1, 224], strides = [1, 1]} : vector<14x224xf32> to vector<1x224xf32>
    %23 = arith.maximumf %21, %22 : vector<1x224xf32>
    %24 = vector.extract_strided_slice %20 {offsets = [2, 0], sizes = [1, 224], strides = [1, 1]} : vector<14x224xf32> to vector<1x224xf32>
    %25 = vector.extract_strided_slice %20 {offsets = [3, 0], sizes = [1, 224], strides = [1, 1]} : vector<14x224xf32> to vector<1x224xf32>
    %26 = arith.maximumf %24, %25 : vector<1x224xf32>
    %27 = vector.extract_strided_slice %20 {offsets = [4, 0], sizes = [1, 224], strides = [1, 1]} : vector<14x224xf32> to vector<1x224xf32>
    %28 = vector.extract_strided_slice %20 {offsets = [5, 0], sizes = [1, 224], strides = [1, 1]} : vector<14x224xf32> to vector<1x224xf32>
    %29 = arith.maximumf %27, %28 : vector<1x224xf32>
    %30 = vector.extract_strided_slice %20 {offsets = [6, 0], sizes = [1, 224], strides = [1, 1]} : vector<14x224xf32> to vector<1x224xf32>
    %31 = vector.extract_strided_slice %20 {offsets = [7, 0], sizes = [1, 224], strides = [1, 1]} : vector<14x224xf32> to vector<1x224xf32>
    %32 = arith.maximumf %30, %31 : vector<1x224xf32>
    %33 = vector.extract_strided_slice %20 {offsets = [8, 0], sizes = [1, 224], strides = [1, 1]} : vector<14x224xf32> to vector<1x224xf32>
    %34 = vector.extract_strided_slice %20 {offsets = [9, 0], sizes = [1, 224], strides = [1, 1]} : vector<14x224xf32> to vector<1x224xf32>
    %35 = arith.maximumf %33, %34 : vector<1x224xf32>
    %36 = vector.extract_strided_slice %20 {offsets = [10, 0], sizes = [1, 224], strides = [1, 1]} : vector<14x224xf32> to vector<1x224xf32>
    %37 = vector.extract_strided_slice %20 {offsets = [11, 0], sizes = [1, 224], strides = [1, 1]} : vector<14x224xf32> to vector<1x224xf32>
    %38 = arith.maximumf %36, %37 : vector<1x224xf32>
    %39 = vector.extract_strided_slice %20 {offsets = [12, 0], sizes = [1, 224], strides = [1, 1]} : vector<14x224xf32> to vector<1x224xf32>
    %40 = vector.extract_strided_slice %20 {offsets = [13, 0], sizes = [1, 224], strides = [1, 1]} : vector<14x224xf32> to vector<1x224xf32>
    %41 = arith.maximumf %39, %40 : vector<1x224xf32>
    %42 = tpu.concatenate %23, %26, %29, %32, %35, %38, %41 in 0 : vector<1x224xf32>, vector<1x224xf32>, vector<1x224xf32>, vector<1x224xf32>, vector<1x224xf32>, vector<1x224xf32>, vector<1x224xf32> -> vector<7x224xf32>
    %43 = vector.extract_strided_slice %42 {offsets = [0, 0], sizes = [7, 16], strides = [1, 1]} : vector<7x224xf32> to vector<7x16xf32>
    %44 = vector.extract_strided_slice %42 {offsets = [0, 32], sizes = [7, 16], strides = [1, 1]} : vector<7x224xf32> to vector<7x16xf32>
    %45 = vector.extract_strided_slice %42 {offsets = [0, 64], sizes = [7, 16], strides = [1, 1]} : vector<7x224xf32> to vector<7x16xf32>
    %46 = vector.extract_strided_slice %42 {offsets = [0, 96], sizes = [7, 16], strides = [1, 1]} : vector<7x224xf32> to vector<7x16xf32>
    %47 = vector.extract_strided_slice %42 {offsets = [0, 128], sizes = [7, 16], strides = [1, 1]} : vector<7x224xf32> to vector<7x16xf32>
    %48 = vector.extract_strided_slice %42 {offsets = [0, 160], sizes = [7, 16], strides = [1, 1]} : vector<7x224xf32> to vector<7x16xf32>
    %49 = vector.extract_strided_slice %42 {offsets = [0, 192], sizes = [7, 16], strides = [1, 1]} : vector<7x224xf32> to vector<7x16xf32>
    %50 = tpu.concatenate %43, %44, %45, %46, %47, %48, %49 in 1 : vector<7x16xf32>, vector<7x16xf32>, vector<7x16xf32>, vector<7x16xf32>, vector<7x16xf32>, vector<7x16xf32>, vector<7x16xf32> -> vector<7x112xf32>
    %51 = vector.extract_strided_slice %42 {offsets = [0, 16], sizes = [7, 16], strides = [1, 1]} : vector<7x224xf32> to vector<7x16xf32>
    %52 = vector.extract_strided_slice %42 {offsets = [0, 48], sizes = [7, 16], strides = [1, 1]} : vector<7x224xf32> to vector<7x16xf32>
    %53 = vector.extract_strided_slice %42 {offsets = [0, 80], sizes = [7, 16], strides = [1, 1]} : vector<7x224xf32> to vector<7x16xf32>
    %54 = vector.extract_strided_slice %42 {offsets = [0, 112], sizes = [7, 16], strides = [1, 1]} : vector<7x224xf32> to vector<7x16xf32>
    %55 = vector.extract_strided_slice %42 {offsets = [0, 144], sizes = [7, 16], strides = [1, 1]} : vector<7x224xf32> to vector<7x16xf32>
    %56 = vector.extract_strided_slice %42 {offsets = [0, 176], sizes = [7, 16], strides = [1, 1]} : vector<7x224xf32> to vector<7x16xf32>
    %57 = vector.extract_strided_slice %42 {offsets = [0, 208], sizes = [7, 16], strides = [1, 1]} : vector<7x224xf32> to vector<7x16xf32>
    %58 = tpu.concatenate %51, %52, %53, %54, %55, %56, %57 in 1 : vector<7x16xf32>, vector<7x16xf32>, vector<7x16xf32>, vector<7x16xf32>, vector<7x16xf32>, vector<7x16xf32>, vector<7x16xf32> -> vector<7x112xf32>
    %59 = arith.maximumf %50, %58 : vector<7x112xf32>
    %60 = vector.extract_strided_slice %59 {offsets = [0, 0], sizes = [5, 112], strides = [1, 1]} : vector<7x112xf32> to vector<5x112xf32>
    %c0_14 = arith.constant 0 : index
    %c0_15 = arith.constant 0 : index
    %c0_16 = arith.constant 0 : index
    %61 = vector.load %arg5[%c0_14, %c0_15, %c0_16] : memref<3x112x160xf32, #tpu.memory_space<vmem>>, vector<1x112x160xf32>
    %62 = vector.shape_cast %61 : vector<1x112x160xf32> to vector<112x160xf32>
    %cst_17 = arith.constant dense<0.000000e+00> : vector<5x160xf32>
    %63 = tpu.matmul %60, %62, %cst_17 {dimension_numbers = #tpu.dot_dimension_numbers<[1], [0], [0], [1], [0, 0, 1, 1], [], []>} : vector<5x112xf32>, vector<112x160xf32>, vector<5x160xf32> -> vector<5x160xf32>
    %64 = vector.extract_strided_slice %59 {offsets = [1, 0], sizes = [5, 112], strides = [1, 1]} : vector<7x112xf32> to vector<5x112xf32>
    %c1_18 = arith.constant 1 : index
    %c0_19 = arith.constant 0 : index
    %c0_20 = arith.constant 0 : index
    %65 = vector.load %arg5[%c1_18, %c0_19, %c0_20] : memref<3x112x160xf32, #tpu.memory_space<vmem>>, vector<1x112x160xf32>
    %66 = vector.shape_cast %65 : vector<1x112x160xf32> to vector<112x160xf32>
    %cst_21 = arith.constant dense<0.000000e+00> : vector<5x160xf32>
    %67 = tpu.matmul %64, %66, %cst_21 {dimension_numbers = #tpu.dot_dimension_numbers<[1], [0], [0], [1], [0, 0, 1, 1], [], []>} : vector<5x112xf32>, vector<112x160xf32>, vector<5x160xf32> -> vector<5x160xf32>
    %68 = arith.addf %63, %67 : vector<5x160xf32>
    %69 = vector.extract_strided_slice %59 {offsets = [2, 0], sizes = [5, 112], strides = [1, 1]} : vector<7x112xf32> to vector<5x112xf32>
    %c2_22 = arith.constant 2 : index
    %c0_23 = arith.constant 0 : index
    %c0_24 = arith.constant 0 : index
    %70 = vector.load %arg5[%c2_22, %c0_23, %c0_24] : memref<3x112x160xf32, #tpu.memory_space<vmem>>, vector<1x112x160xf32>
    %71 = vector.shape_cast %70 : vector<1x112x160xf32> to vector<112x160xf32>
    %cst_25 = arith.constant dense<0.000000e+00> : vector<5x160xf32>
    %72 = tpu.matmul %69, %71, %cst_25 {dimension_numbers = #tpu.dot_dimension_numbers<[1], [0], [0], [1], [0, 0, 1, 1], [], []>} : vector<5x112xf32>, vector<112x160xf32>, vector<5x160xf32> -> vector<5x160xf32>
    %73 = arith.addf %68, %72 : vector<5x160xf32>
    %c0_26 = arith.constant 0 : index
    %c0_27 = arith.constant 0 : index
    %74 = vector.load %arg6[%c0_26, %c0_27] : memref<1x160xf32, #tpu.memory_space<vmem>>, vector<1x160xf32>
    %75 = vector.broadcast %74 : vector<1x160xf32> to vector<5x160xf32>
    %76 = arith.addf %73, %75 : vector<5x160xf32>
    %cst_28 = arith.constant 0.000000e+00 : f32
    %77 = vector.broadcast %cst_28 : f32 to vector<5x160xf32>
    %78 = arith.maximumf %76, %77 : vector<5x160xf32>
    %79 = vector.extract_strided_slice %78 {offsets = [0, 0], sizes = [1, 160], strides = [1, 1]} : vector<5x160xf32> to vector<1x160xf32>
    %80 = vector.extract_strided_slice %78 {offsets = [1, 0], sizes = [1, 160], strides = [1, 1]} : vector<5x160xf32> to vector<1x160xf32>
    %81 = arith.maximumf %79, %80 : vector<1x160xf32>
    %82 = vector.extract_strided_slice %78 {offsets = [2, 0], sizes = [1, 160], strides = [1, 1]} : vector<5x160xf32> to vector<1x160xf32>
    %83 = vector.extract_strided_slice %78 {offsets = [3, 0], sizes = [1, 160], strides = [1, 1]} : vector<5x160xf32> to vector<1x160xf32>
    %84 = arith.maximumf %82, %83 : vector<1x160xf32>
    %85 = tpu.concatenate %81, %84 in 0 : vector<1x160xf32>, vector<1x160xf32> -> vector<2x160xf32>
    %86 = vector.extract_strided_slice %85 {offsets = [0, 0], sizes = [2, 32], strides = [1, 1]} : vector<2x160xf32> to vector<2x32xf32>
    %87 = vector.extract_strided_slice %85 {offsets = [0, 64], sizes = [2, 32], strides = [1, 1]} : vector<2x160xf32> to vector<2x32xf32>
    %88 = tpu.concatenate %86, %87 in 1 : vector<2x32xf32>, vector<2x32xf32> -> vector<2x64xf32>
    %89 = vector.extract_strided_slice %85 {offsets = [0, 32], sizes = [2, 32], strides = [1, 1]} : vector<2x160xf32> to vector<2x32xf32>
    %90 = vector.extract_strided_slice %85 {offsets = [0, 96], sizes = [2, 32], strides = [1, 1]} : vector<2x160xf32> to vector<2x32xf32>
    %91 = tpu.concatenate %89, %90 in 1 : vector<2x32xf32>, vector<2x32xf32> -> vector<2x64xf32>
    %92 = arith.maximumf %88, %91 : vector<2x64xf32>
    %93 = vector.extract_strided_slice %92 {offsets = [0, 0], sizes = [1, 64], strides = [1, 1]} : vector<2x64xf32> to vector<1x64xf32>
    %94 = vector.extract_strided_slice %92 {offsets = [1, 0], sizes = [1, 64], strides = [1, 1]} : vector<2x64xf32> to vector<1x64xf32>
    %95 = tpu.concatenate %93, %94 in 1 : vector<1x64xf32>, vector<1x64xf32> -> vector<1x128xf32>
    %c1_29 = arith.constant 1 : index
    %c0_30 = arith.constant 0 : index
    %c0_31 = arith.constant 0 : index
    %96 = vector.load %arg1[%c1_29, %c0_30, %c0_31] : memref<2x16x256xf32, #tpu.memory_space<vmem>>, vector<1x16x256xf32>
    %97 = vector.shape_cast %96 : vector<1x16x256xf32> to vector<16x256xf32>
    %98 = vector.extract_strided_slice %97 {offsets = [0, 0], sizes = [14, 256], strides = [1, 1]} : vector<16x256xf32> to vector<14x256xf32>
    %c0_32 = arith.constant 0 : index
    %c0_33 = arith.constant 0 : index
    %c0_34 = arith.constant 0 : index
    %99 = vector.load %arg3[%c0_32, %c0_33, %c0_34] : memref<3x256x224xf32, #tpu.memory_space<vmem>>, vector<1x256x224xf32>
    %100 = vector.shape_cast %99 : vector<1x256x224xf32> to vector<256x224xf32>
    %cst_35 = arith.constant dense<0.000000e+00> : vector<14x224xf32>
    %101 = tpu.matmul %98, %100, %cst_35 {dimension_numbers = #tpu.dot_dimension_numbers<[1], [0], [0], [1], [0, 0, 1, 1], [], []>} : vector<14x256xf32>, vector<256x224xf32>, vector<14x224xf32> -> vector<14x224xf32>
    %102 = vector.extract_strided_slice %97 {offsets = [1, 0], sizes = [14, 256], strides = [1, 1]} : vector<16x256xf32> to vector<14x256xf32>
    %c1_36 = arith.constant 1 : index
    %c0_37 = arith.constant 0 : index
    %c0_38 = arith.constant 0 : index
    %103 = vector.load %arg3[%c1_36, %c0_37, %c0_38] : memref<3x256x224xf32, #tpu.memory_space<vmem>>, vector<1x256x224xf32>
    %104 = vector.shape_cast %103 : vector<1x256x224xf32> to vector<256x224xf32>
    %cst_39 = arith.constant dense<0.000000e+00> : vector<14x224xf32>
    %105 = tpu.matmul %102, %104, %cst_39 {dimension_numbers = #tpu.dot_dimension_numbers<[1], [0], [0], [1], [0, 0, 1, 1], [], []>} : vector<14x256xf32>, vector<256x224xf32>, vector<14x224xf32> -> vector<14x224xf32>
    %106 = arith.addf %101, %105 : vector<14x224xf32>
    %107 = vector.extract_strided_slice %97 {offsets = [2, 0], sizes = [14, 256], strides = [1, 1]} : vector<16x256xf32> to vector<14x256xf32>
    %c2_40 = arith.constant 2 : index
    %c0_41 = arith.constant 0 : index
    %c0_42 = arith.constant 0 : index
    %108 = vector.load %arg3[%c2_40, %c0_41, %c0_42] : memref<3x256x224xf32, #tpu.memory_space<vmem>>, vector<1x256x224xf32>
    %109 = vector.shape_cast %108 : vector<1x256x224xf32> to vector<256x224xf32>
    %cst_43 = arith.constant dense<0.000000e+00> : vector<14x224xf32>
    %110 = tpu.matmul %107, %109, %cst_43 {dimension_numbers = #tpu.dot_dimension_numbers<[1], [0], [0], [1], [0, 0, 1, 1], [], []>} : vector<14x256xf32>, vector<256x224xf32>, vector<14x224xf32> -> vector<14x224xf32>
    %111 = arith.addf %106, %110 : vector<14x224xf32>
    %c0_44 = arith.constant 0 : index
    %c0_45 = arith.constant 0 : index
    %112 = vector.load %arg4[%c0_44, %c0_45] : memref<1x224xf32, #tpu.memory_space<vmem>>, vector<1x224xf32>
    %113 = vector.broadcast %112 : vector<1x224xf32> to vector<14x224xf32>
    %114 = arith.addf %111, %113 : vector<14x224xf32>
    %cst_46 = arith.constant 0.000000e+00 : f32
    %115 = vector.broadcast %cst_46 : f32 to vector<14x224xf32>
    %116 = arith.maximumf %114, %115 : vector<14x224xf32>
    %117 = vector.extract_strided_slice %116 {offsets = [0, 0], sizes = [1, 224], strides = [1, 1]} : vector<14x224xf32> to vector<1x224xf32>
    %118 = vector.extract_strided_slice %116 {offsets = [1, 0], sizes = [1, 224], strides = [1, 1]} : vector<14x224xf32> to vector<1x224xf32>
    %119 = arith.maximumf %117, %118 : vector<1x224xf32>
    %120 = vector.extract_strided_slice %116 {offsets = [2, 0], sizes = [1, 224], strides = [1, 1]} : vector<14x224xf32> to vector<1x224xf32>
    %121 = vector.extract_strided_slice %116 {offsets = [3, 0], sizes = [1, 224], strides = [1, 1]} : vector<14x224xf32> to vector<1x224xf32>
    %122 = arith.maximumf %120, %121 : vector<1x224xf32>
    %123 = vector.extract_strided_slice %116 {offsets = [4, 0], sizes = [1, 224], strides = [1, 1]} : vector<14x224xf32> to vector<1x224xf32>
    %124 = vector.extract_strided_slice %116 {offsets = [5, 0], sizes = [1, 224], strides = [1, 1]} : vector<14x224xf32> to vector<1x224xf32>
    %125 = arith.maximumf %123, %124 : vector<1x224xf32>
    %126 = vector.extract_strided_slice %116 {offsets = [6, 0], sizes = [1, 224], strides = [1, 1]} : vector<14x224xf32> to vector<1x224xf32>
    %127 = vector.extract_strided_slice %116 {offsets = [7, 0], sizes = [1, 224], strides = [1, 1]} : vector<14x224xf32> to vector<1x224xf32>
    %128 = arith.maximumf %126, %127 : vector<1x224xf32>
    %129 = vector.extract_strided_slice %116 {offsets = [8, 0], sizes = [1, 224], strides = [1, 1]} : vector<14x224xf32> to vector<1x224xf32>
    %130 = vector.extract_strided_slice %116 {offsets = [9, 0], sizes = [1, 224], strides = [1, 1]} : vector<14x224xf32> to vector<1x224xf32>
    %131 = arith.maximumf %129, %130 : vector<1x224xf32>
    %132 = vector.extract_strided_slice %116 {offsets = [10, 0], sizes = [1, 224], strides = [1, 1]} : vector<14x224xf32> to vector<1x224xf32>
    %133 = vector.extract_strided_slice %116 {offsets = [11, 0], sizes = [1, 224], strides = [1, 1]} : vector<14x224xf32> to vector<1x224xf32>
    %134 = arith.maximumf %132, %133 : vector<1x224xf32>
    %135 = vector.extract_strided_slice %116 {offsets = [12, 0], sizes = [1, 224], strides = [1, 1]} : vector<14x224xf32> to vector<1x224xf32>
    %136 = vector.extract_strided_slice %116 {offsets = [13, 0], sizes = [1, 224], strides = [1, 1]} : vector<14x224xf32> to vector<1x224xf32>
    %137 = arith.maximumf %135, %136 : vector<1x224xf32>
    %138 = tpu.concatenate %119, %122, %125, %128, %131, %134, %137 in 0 : vector<1x224xf32>, vector<1x224xf32>, vector<1x224xf32>, vector<1x224xf32>, vector<1x224xf32>, vector<1x224xf32>, vector<1x224xf32> -> vector<7x224xf32>
    %139 = vector.extract_strided_slice %138 {offsets = [0, 0], sizes = [7, 16], strides = [1, 1]} : vector<7x224xf32> to vector<7x16xf32>
    %140 = vector.extract_strided_slice %138 {offsets = [0, 32], sizes = [7, 16], strides = [1, 1]} : vector<7x224xf32> to vector<7x16xf32>
    %141 = vector.extract_strided_slice %138 {offsets = [0, 64], sizes = [7, 16], strides = [1, 1]} : vector<7x224xf32> to vector<7x16xf32>
    %142 = vector.extract_strided_slice %138 {offsets = [0, 96], sizes = [7, 16], strides = [1, 1]} : vector<7x224xf32> to vector<7x16xf32>
    %143 = vector.extract_strided_slice %138 {offsets = [0, 128], sizes = [7, 16], strides = [1, 1]} : vector<7x224xf32> to vector<7x16xf32>
    %144 = vector.extract_strided_slice %138 {offsets = [0, 160], sizes = [7, 16], strides = [1, 1]} : vector<7x224xf32> to vector<7x16xf32>
    %145 = vector.extract_strided_slice %138 {offsets = [0, 192], sizes = [7, 16], strides = [1, 1]} : vector<7x224xf32> to vector<7x16xf32>
    %146 = tpu.concatenate %139, %140, %141, %142, %143, %144, %145 in 1 : vector<7x16xf32>, vector<7x16xf32>, vector<7x16xf32>, vector<7x16xf32>, vector<7x16xf32>, vector<7x16xf32>, vector<7x16xf32> -> vector<7x112xf32>
    %147 = vector.extract_strided_slice %138 {offsets = [0, 16], sizes = [7, 16], strides = [1, 1]} : vector<7x224xf32> to vector<7x16xf32>
    %148 = vector.extract_strided_slice %138 {offsets = [0, 48], sizes = [7, 16], strides = [1, 1]} : vector<7x224xf32> to vector<7x16xf32>
    %149 = vector.extract_strided_slice %138 {offsets = [0, 80], sizes = [7, 16], strides = [1, 1]} : vector<7x224xf32> to vector<7x16xf32>
    %150 = vector.extract_strided_slice %138 {offsets = [0, 112], sizes = [7, 16], strides = [1, 1]} : vector<7x224xf32> to vector<7x16xf32>
    %151 = vector.extract_strided_slice %138 {offsets = [0, 144], sizes = [7, 16], strides = [1, 1]} : vector<7x224xf32> to vector<7x16xf32>
    %152 = vector.extract_strided_slice %138 {offsets = [0, 176], sizes = [7, 16], strides = [1, 1]} : vector<7x224xf32> to vector<7x16xf32>
    %153 = vector.extract_strided_slice %138 {offsets = [0, 208], sizes = [7, 16], strides = [1, 1]} : vector<7x224xf32> to vector<7x16xf32>
    %154 = tpu.concatenate %147, %148, %149, %150, %151, %152, %153 in 1 : vector<7x16xf32>, vector<7x16xf32>, vector<7x16xf32>, vector<7x16xf32>, vector<7x16xf32>, vector<7x16xf32>, vector<7x16xf32> -> vector<7x112xf32>
    %155 = arith.maximumf %146, %154 : vector<7x112xf32>
    %156 = vector.extract_strided_slice %155 {offsets = [0, 0], sizes = [5, 112], strides = [1, 1]} : vector<7x112xf32> to vector<5x112xf32>
    %c0_47 = arith.constant 0 : index
    %c0_48 = arith.constant 0 : index
    %c0_49 = arith.constant 0 : index
    %157 = vector.load %arg5[%c0_47, %c0_48, %c0_49] : memref<3x112x160xf32, #tpu.memory_space<vmem>>, vector<1x112x160xf32>
    %158 = vector.shape_cast %157 : vector<1x112x160xf32> to vector<112x160xf32>
    %cst_50 = arith.constant dense<0.000000e+00> : vector<5x160xf32>
    %159 = tpu.matmul %156, %158, %cst_50 {dimension_numbers = #tpu.dot_dimension_numbers<[1], [0], [0], [1], [0, 0, 1, 1], [], []>} : vector<5x112xf32>, vector<112x160xf32>, vector<5x160xf32> -> vector<5x160xf32>
    %160 = vector.extract_strided_slice %155 {offsets = [1, 0], sizes = [5, 112], strides = [1, 1]} : vector<7x112xf32> to vector<5x112xf32>
    %c1_51 = arith.constant 1 : index
    %c0_52 = arith.constant 0 : index
    %c0_53 = arith.constant 0 : index
    %161 = vector.load %arg5[%c1_51, %c0_52, %c0_53] : memref<3x112x160xf32, #tpu.memory_space<vmem>>, vector<1x112x160xf32>
    %162 = vector.shape_cast %161 : vector<1x112x160xf32> to vector<112x160xf32>
    %cst_54 = arith.constant dense<0.000000e+00> : vector<5x160xf32>
    %163 = tpu.matmul %160, %162, %cst_54 {dimension_numbers = #tpu.dot_dimension_numbers<[1], [0], [0], [1], [0, 0, 1, 1], [], []>} : vector<5x112xf32>, vector<112x160xf32>, vector<5x160xf32> -> vector<5x160xf32>
    %164 = arith.addf %159, %163 : vector<5x160xf32>
    %165 = vector.extract_strided_slice %155 {offsets = [2, 0], sizes = [5, 112], strides = [1, 1]} : vector<7x112xf32> to vector<5x112xf32>
    %c2_55 = arith.constant 2 : index
    %c0_56 = arith.constant 0 : index
    %c0_57 = arith.constant 0 : index
    %166 = vector.load %arg5[%c2_55, %c0_56, %c0_57] : memref<3x112x160xf32, #tpu.memory_space<vmem>>, vector<1x112x160xf32>
    %167 = vector.shape_cast %166 : vector<1x112x160xf32> to vector<112x160xf32>
    %cst_58 = arith.constant dense<0.000000e+00> : vector<5x160xf32>
    %168 = tpu.matmul %165, %167, %cst_58 {dimension_numbers = #tpu.dot_dimension_numbers<[1], [0], [0], [1], [0, 0, 1, 1], [], []>} : vector<5x112xf32>, vector<112x160xf32>, vector<5x160xf32> -> vector<5x160xf32>
    %169 = arith.addf %164, %168 : vector<5x160xf32>
    %c0_59 = arith.constant 0 : index
    %c0_60 = arith.constant 0 : index
    %170 = vector.load %arg6[%c0_59, %c0_60] : memref<1x160xf32, #tpu.memory_space<vmem>>, vector<1x160xf32>
    %171 = vector.broadcast %170 : vector<1x160xf32> to vector<5x160xf32>
    %172 = arith.addf %169, %171 : vector<5x160xf32>
    %cst_61 = arith.constant 0.000000e+00 : f32
    %173 = vector.broadcast %cst_61 : f32 to vector<5x160xf32>
    %174 = arith.maximumf %172, %173 : vector<5x160xf32>
    %175 = vector.extract_strided_slice %174 {offsets = [0, 0], sizes = [1, 160], strides = [1, 1]} : vector<5x160xf32> to vector<1x160xf32>
    %176 = vector.extract_strided_slice %174 {offsets = [1, 0], sizes = [1, 160], strides = [1, 1]} : vector<5x160xf32> to vector<1x160xf32>
    %177 = arith.maximumf %175, %176 : vector<1x160xf32>
    %178 = vector.extract_strided_slice %174 {offsets = [2, 0], sizes = [1, 160], strides = [1, 1]} : vector<5x160xf32> to vector<1x160xf32>
    %179 = vector.extract_strided_slice %174 {offsets = [3, 0], sizes = [1, 160], strides = [1, 1]} : vector<5x160xf32> to vector<1x160xf32>
    %180 = arith.maximumf %178, %179 : vector<1x160xf32>
    %181 = tpu.concatenate %177, %180 in 0 : vector<1x160xf32>, vector<1x160xf32> -> vector<2x160xf32>
    %182 = vector.extract_strided_slice %181 {offsets = [0, 0], sizes = [2, 32], strides = [1, 1]} : vector<2x160xf32> to vector<2x32xf32>
    %183 = vector.extract_strided_slice %181 {offsets = [0, 64], sizes = [2, 32], strides = [1, 1]} : vector<2x160xf32> to vector<2x32xf32>
    %184 = tpu.concatenate %182, %183 in 1 : vector<2x32xf32>, vector<2x32xf32> -> vector<2x64xf32>
    %185 = vector.extract_strided_slice %181 {offsets = [0, 32], sizes = [2, 32], strides = [1, 1]} : vector<2x160xf32> to vector<2x32xf32>
    %186 = vector.extract_strided_slice %181 {offsets = [0, 96], sizes = [2, 32], strides = [1, 1]} : vector<2x160xf32> to vector<2x32xf32>
    %187 = tpu.concatenate %185, %186 in 1 : vector<2x32xf32>, vector<2x32xf32> -> vector<2x64xf32>
    %188 = arith.maximumf %184, %187 : vector<2x64xf32>
    %189 = vector.extract_strided_slice %188 {offsets = [0, 0], sizes = [1, 64], strides = [1, 1]} : vector<2x64xf32> to vector<1x64xf32>
    %190 = vector.extract_strided_slice %188 {offsets = [1, 0], sizes = [1, 64], strides = [1, 1]} : vector<2x64xf32> to vector<1x64xf32>
    %191 = tpu.concatenate %189, %190 in 1 : vector<1x64xf32>, vector<1x64xf32> -> vector<1x128xf32>
    %192 = tpu.concatenate %95, %191 in 0 : vector<1x128xf32>, vector<1x128xf32> -> vector<2x128xf32>
    %c0_62 = arith.constant 0 : index
    %c0_63 = arith.constant 0 : index
    %193 = vector.load %arg2[%c0_62, %c0_63] : memref<2x3xf32, #tpu.memory_space<vmem>>, vector<2x3xf32>
    %c0_64 = arith.constant 0 : index
    %c0_65 = arith.constant 0 : index
    %194 = vector.load %arg7[%c0_64, %c0_65] : memref<3x16xf32, #tpu.memory_space<vmem>>, vector<3x16xf32>
    %cst_66 = arith.constant dense<0.000000e+00> : vector<2x16xf32>
    %195 = tpu.matmul %193, %194, %cst_66 {dimension_numbers = #tpu.dot_dimension_numbers<[1], [0], [0], [1], [0, 0, 1, 1], [], []>} : vector<2x3xf32>, vector<3x16xf32>, vector<2x16xf32> -> vector<2x16xf32>
    %c0_67 = arith.constant 0 : index
    %c0_68 = arith.constant 0 : index
    %196 = vector.load %arg8[%c0_67, %c0_68] : memref<1x16xf32, #tpu.memory_space<vmem>>, vector<1x16xf32>
    %197 = vector.broadcast %196 : vector<1x16xf32> to vector<2x16xf32>
    %198 = arith.addf %195, %197 : vector<2x16xf32>
    %cst_69 = arith.constant 0.000000e+00 : f32
    %199 = vector.broadcast %cst_69 : f32 to vector<2x16xf32>
    %200 = arith.maximumf %198, %199 : vector<2x16xf32>
    %c0_70 = arith.constant 0 : index
    %c0_71 = arith.constant 0 : index
    %201 = vector.load %arg9[%c0_70, %c0_71] : memref<128x16xf32, #tpu.memory_space<vmem>>, vector<128x16xf32>
    %cst_72 = arith.constant dense<0.000000e+00> : vector<2x16xf32>
    %202 = tpu.matmul %192, %201, %cst_72 {dimension_numbers = #tpu.dot_dimension_numbers<[1], [0], [0], [1], [0, 0, 1, 1], [], []>} : vector<2x128xf32>, vector<128x16xf32>, vector<2x16xf32> -> vector<2x16xf32>
    %c0_73 = arith.constant 0 : index
    %c0_74 = arith.constant 0 : index
    %203 = vector.load %arg10[%c0_73, %c0_74] : memref<16x16xf32, #tpu.memory_space<vmem>>, vector<16x16xf32>
    %cst_75 = arith.constant dense<0.000000e+00> : vector<2x16xf32>
    %204 = tpu.matmul %200, %203, %cst_75 {dimension_numbers = #tpu.dot_dimension_numbers<[1], [0], [0], [1], [0, 0, 1, 1], [], []>} : vector<2x16xf32>, vector<16x16xf32>, vector<2x16xf32> -> vector<2x16xf32>
    %205 = arith.addf %202, %204 : vector<2x16xf32>
    %c0_76 = arith.constant 0 : index
    %c0_77 = arith.constant 0 : index
    %206 = vector.load %arg11[%c0_76, %c0_77] : memref<1x16xf32, #tpu.memory_space<vmem>>, vector<1x16xf32>
    %207 = vector.broadcast %206 : vector<1x16xf32> to vector<2x16xf32>
    %208 = arith.addf %205, %207 : vector<2x16xf32>
    %cst_78 = arith.constant 0.000000e+00 : f32
    %209 = vector.broadcast %cst_78 : f32 to vector<2x16xf32>
    %210 = arith.maximumf %208, %209 : vector<2x16xf32>
    %c0_79 = arith.constant 0 : index
    %c0_80 = arith.constant 0 : index
    %211 = vector.load %arg12[%c0_79, %c0_80] : memref<16x4xf32, #tpu.memory_space<vmem>>, vector<16x4xf32>
    %cst_81 = arith.constant dense<0.000000e+00> : vector<2x4xf32>
    %212 = tpu.matmul %210, %211, %cst_81 {dimension_numbers = #tpu.dot_dimension_numbers<[1], [0], [0], [1], [0, 0, 1, 1], [], []>} : vector<2x16xf32>, vector<16x4xf32>, vector<2x4xf32> -> vector<2x4xf32>
    %c0_82 = arith.constant 0 : index
    %c0_83 = arith.constant 0 : index
    %213 = vector.load %arg13[%c0_82, %c0_83] : memref<1x4xf32, #tpu.memory_space<vmem>>, vector<1x4xf32>
    %214 = vector.broadcast %213 : vector<1x4xf32> to vector<2x4xf32>
    %215 = arith.addf %212, %214 : vector<2x4xf32>
    %c0_84 = arith.constant 0 : index
    %c0_85 = arith.constant 0 : index
    %216 = vector.load %arg14[%c0_84, %c0_85] : memref<2x4xf32, #tpu.memory_space<vmem>>, vector<2x4xf32>
    tpu.vector_store %arg14[%c0_84, %c0_85], %215 {strides = array<i32>} : memref<2x4xf32, #tpu.memory_space<vmem>>, vector<2x4xf32>,
    return
  }
  func.func @transform_0(%arg0: i32) -> (i32, i32, i32) {
    %c0_i32 = arith.constant 0 : i32
    %c0_i32_0 = arith.constant 0 : i32
    %c0_i32_1 = arith.constant 0 : i32
    return %arg0, %c0_i32, %c0_i32_0 : i32, i32, i32
  }
  func.func @transform_1(%arg0: i32) -> (i32, i32) {
    %c0_i32 = arith.constant 0 : i32
    %c0_i32_0 = arith.constant 0 : i32
    return %arg0, %c0_i32 : i32, i32
  }
  func.func @transform_2(%arg0: i32) -> (i32, i32, i32) {
    %c0_i32 = arith.constant 0 : i32
    %c0_i32_0 = arith.constant 0 : i32
    %c0_i32_1 = arith.constant 0 : i32
    %c0_i32_2 = arith.constant 0 : i32
    return %c0_i32, %c0_i32_0, %c0_i32_1 : i32, i32, i32
  }
  func.func @transform_3(%arg0: i32) -> (i32, i32) {
    %c0_i32 = arith.constant 0 : i32
    %c0_i32_0 = arith.constant 0 : i32
    %c0_i32_1 = arith.constant 0 : i32
    return %c0_i32, %c0_i32_0 : i32, i32
  }
  func.func @transform_4(%arg0: i32) -> (i32, i32, i32) {
    %c0_i32 = arith.constant 0 : i32
    %c0_i32_0 = arith.constant 0 : i32
    %c0_i32_1 = arith.constant 0 : i32
    %c0_i32_2 = arith.constant 0 : i32
    return %c0_i32, %c0_i32_0, %c0_i32_1 : i32, i32, i32
  }
  func.func @transform_5(%arg0: i32) -> (i32, i32) {
    %c0_i32 = arith.constant 0 : i32
    %c0_i32_0 = arith.constant 0 : i32
    %c0_i32_1 = arith.constant 0 : i32
    return %c0_i32, %c0_i32_0 : i32, i32
  }
  func.func @transform_6(%arg0: i32) -> (i32, i32) {
    %c0_i32 = arith.constant 0 : i32
    %c0_i32_0 = arith.constant 0 : i32
    %c0_i32_1 = arith.constant 0 : i32
    return %c0_i32, %c0_i32_0 : i32, i32
  }
  func.func @transform_7(%arg0: i32) -> (i32, i32) {
    %c0_i32 = arith.constant 0 : i32
    %c0_i32_0 = arith.constant 0 : i32
    %c0_i32_1 = arith.constant 0 : i32
    return %c0_i32, %c0_i32_0 : i32, i32
  }
  func.func @transform_8(%arg0: i32) -> (i32, i32) {
    %c0_i32 = arith.constant 0 : i32
    %c0_i32_0 = arith.constant 0 : i32
    %c0_i32_1 = arith.constant 0 : i32
    return %c0_i32, %c0_i32_0 : i32, i32
  }
  func.func @transform_9(%arg0: i32) -> (i32, i32) {
    %c0_i32 = arith.constant 0 : i32
    %c0_i32_0 = arith.constant 0 : i32
    %c0_i32_1 = arith.constant 0 : i32
    return %c0_i32, %c0_i32_0 : i32, i32
  }
  func.func @transform_10(%arg0: i32) -> (i32, i32) {
    %c0_i32 = arith.constant 0 : i32
    %c0_i32_0 = arith.constant 0 : i32
    %c0_i32_1 = arith.constant 0 : i32
    return %c0_i32, %c0_i32_0 : i32, i32
  }
  func.func @transform_11(%arg0: i32) -> (i32, i32) {
    %c0_i32 = arith.constant 0 : i32
    %c0_i32_0 = arith.constant 0 : i32
    %c0_i32_1 = arith.constant 0 : i32
    return %c0_i32, %c0_i32_0 : i32, i32
  }
  func.func @transform_12(%arg0: i32) -> (i32, i32) {
    %c0_i32 = arith.constant 0 : i32
    %c0_i32_0 = arith.constant 0 : i32
    %c0_i32_1 = arith.constant 0 : i32
    return %c0_i32, %c0_i32_0 : i32, i32
  }
  func.func @transform_13(%arg0: i32) -> (i32, i32) {
    %c0_i32 = arith.constant 0 : i32
    %c0_i32_0 = arith.constant 0 : i32
    return %arg0, %c0_i32 : i32, i32
  }
}

</mosaic_0001>

<llo_original>
// kernel: dqn_forward.1
$region0: #{dqn_forward.1}
  #allocation0 [shape = 'u32[]', space=smem, size = 0x4, offset = 0x4, fixed_abs, tag = 'smem constant byte address 0x4 - core index']
  #allocation1 [shape = 'u32[72,128]{1,0:T(1,128)}', space=vmem, size = 0x9000, scoped, tag = 'internal scratch']
  %s0 = inlined_call_operand.vmem [shape: f32[2,16,256], index: 0, kind: input, shape index: {}]
  %s1 = inlined_call_operand.vmem [shape: f32[2,3], index: 1, kind: input, shape index: {}]
  %s2 = inlined_call_operand.vmem [shape: f32[3,256,224], index: 2, kind: input, shape index: {}]
  %s3 = inlined_call_operand.vmem [shape: f32[1,224], index: 3, kind: input, shape index: {}]
  %s4 = inlined_call_operand.vmem [shape: f32[3,112,160], index: 4, kind: input, shape index: {}]
  %s5 = inlined_call_operand.vmem [shape: f32[1,160], index: 5, kind: input, shape index: {}]
  %s6 = inlined_call_operand.vmem [shape: f32[3,16], index: 6, kind: input, shape index: {}]
  %s7 = inlined_call_operand.vmem [shape: f32[1,16], index: 7, kind: input, shape index: {}]
  %s8 = inlined_call_operand.vmem [shape: f32[128,16], index: 8, kind: input, shape index: {}]
  %s9 = inlined_call_operand.vmem [shape: f32[16,16], index: 9, kind: input, shape index: {}]
  %s10 = inlined_call_operand.vmem [shape: f32[1,16], index: 10, kind: input, shape index: {}]
  %s11 = inlined_call_operand.vmem [shape: f32[16,4], index: 11, kind: input, shape index: {}]
  %s12 = inlined_call_operand.vmem [shape: f32[1,4], index: 12, kind: input, shape index: {}]
  %s13 = inlined_call_operand.hbm [shape: f32[2,4], index: 13, kind: output, shape index: {}]
  %s14 = sld [smem:[#allocation0]]
  $region62: #{dqn_forward.1} parent=0
    _
  %s16 = ssub.s32 1, %s14
  %s17 = scalar_select 0, %s16, %s14
  $region1: #{dqn_forward.1} parent=0
    #allocation2 [shape = 'u8[1024]{0}', space=vmem, size = 0x400, scoped, tag = 'output window, operand 0, single buffered']
    #allocation3 [shape = 's32[1]{0}', space=sflag, size = 0x4, scoped, tag = 'scoped memory for dqn_forward.1']
    %18 = vsyncpa [#allocation3], 0
    // Predicated region
    $region2: #{dqn_forward.1} parent=1 // pred_check
      _
    $region3: #{dqn_forward.1} parent=1 // pred_check_branch
      %20 = sbr.rel (0) target = $region5
    $region4: #{dqn_forward.1} parent=1 // pred_region
      _
    $region5: #{dqn_forward.1} parent=1 // pred_fallthru
      _
    // Predicated region
    $region6: #{dqn_forward.1} parent=1 // pred_check
      _
    $region7: #{dqn_forward.1} parent=1 // pred_check_branch
      %22 = sbr.rel (0) target = $region9
    $region8: #{dqn_forward.1} parent=1 // pred_region
      _
    $region9: #{dqn_forward.1} parent=1 // pred_fallthru
      _
    // Predicated region
    $region10: #{dqn_forward.1} parent=1 // pred_check
      _
    $region11: #{dqn_forward.1} parent=1 // pred_check_branch
      %24 = sbr.rel (0) target = $region13
    $region12: #{dqn_forward.1} parent=1 // pred_region
      _
    $region13: #{dqn_forward.1} parent=1 // pred_fallthru
      _
    // Predicated region
    $region14: #{dqn_forward.1} parent=1 // pred_check
      _
    $region15: #{dqn_forward.1} parent=1 // pred_check_branch
      %26 = sbr.rel (0) target = $region17
    $region16: #{dqn_forward.1} parent=1 // pred_region
      _
    $region17: #{dqn_forward.1} parent=1 // pred_fallthru
      _
    // Predicated region
    $region18: #{dqn_forward.1} parent=1 // pred_check
      _
    $region19: #{dqn_forward.1} parent=1 // pred_check_branch
      %28 = sbr.rel (0) target = $region21
    $region20: #{dqn_forward.1} parent=1 // pred_region
      _
    $region21: #{dqn_forward.1} parent=1 // pred_fallthru
      _
    // Predicated region
    $region22: #{dqn_forward.1} parent=1 // pred_check
      _
    $region23: #{dqn_forward.1} parent=1 // pred_check_branch
      %30 = sbr.rel (0) target = $region25
    $region24: #{dqn_forward.1} parent=1 // pred_region
      _
    $region25: #{dqn_forward.1} parent=1 // pred_fallthru
      _
    // Predicated region
    $region26: #{dqn_forward.1} parent=1 // pred_check
      _
    $region27: #{dqn_forward.1} parent=1 // pred_check_branch
      %32 = sbr.rel (0) target = $region29
    $region28: #{dqn_forward.1} parent=1 // pred_region
      _
    $region29: #{dqn_forward.1} parent=1 // pred_fallthru
      _
    // Predicated region
    $region30: #{dqn_forward.1} parent=1 // pred_check
      _
    $region31: #{dqn_forward.1} parent=1 // pred_check_branch
      %34 = sbr.rel (0) target = $region33
    $region32: #{dqn_forward.1} parent=1 // pred_region
      _
    $region33: #{dqn_forward.1} parent=1 // pred_fallthru
      _
    // Predicated region
    $region34: #{dqn_forward.1} parent=1 // pred_check
      _
    $region35: #{dqn_forward.1} parent=1 // pred_check_branch
      %36 = sbr.rel (0) target = $region37
    $region36: #{dqn_forward.1} parent=1 // pred_region
      _
    $region37: #{dqn_forward.1} parent=1 // pred_fallthru
      _
    // Predicated region
    $region38: #{dqn_forward.1} parent=1 // pred_check
      _
    $region39: #{dqn_forward.1} parent=1 // pred_check_branch
      %38 = sbr.rel (0) target = $region41
    $region40: #{dqn_forward.1} parent=1 // pred_region
      _
    $region41: #{dqn_forward.1} parent=1 // pred_fallthru
      _
    // Predicated region
    $region42: #{dqn_forward.1} parent=1 // pred_check
      _
    $region43: #{dqn_forward.1} parent=1 // pred_check_branch
      %40 = sbr.rel (0) target = $region45
    $region44: #{dqn_forward.1} parent=1 // pred_region
      _
    $region45: #{dqn_forward.1} parent=1 // pred_fallthru
      _
    // Predicated region
    $region46: #{dqn_forward.1} parent=1 // pred_check
      _
    $region47: #{dqn_forward.1} parent=1 // pred_check_branch
      %42 = sbr.rel (0) target = $region49
    $region48: #{dqn_forward.1} parent=1 // pred_region
      _
    $region49: #{dqn_forward.1} parent=1 // pred_fallthru
      _
    // Predicated region
    $region50: #{dqn_forward.1} parent=1 // pred_check
      _
    $region51: #{dqn_forward.1} parent=1 // pred_check_branch
      %44 = sbr.rel (0) target = $region53
    $region52: #{dqn_forward.1} parent=1 // pred_region
      _
    $region53: #{dqn_forward.1} parent=1 // pred_fallthru
      _
    %v45 = vld [vmem:[%s0] sm:$0xff]
    %v46 = vld [vmem:[%s0 + $0x8] sm:$0xff]
    %v47 = vld [vmem:[%s0 + $0x10] sm:$0xff]
    %v48 = vld [vmem:[%s0 + $0x18] sm:$0xff]
    %v49 = vld [vmem:[%s2] sm:$0xff]
    %v50 = vld [vmem:[%s2 + $0x8] sm:$0xff]
    %v51 = vld [vmem:[%s2 + $0x10] sm:$0xff]
    %v52 = vld [vmem:[%s2 + $0x18] sm:$0xff]
    %v53 = vld [vmem:[%s2 + $0x20] sm:$0xff]
    %v54 = vld [vmem:[%s2 + $0x28] sm:$0xff]
    %v55 = vld [vmem:[%s2 + $0x30] sm:$0xff]
    %v56 = vld [vmem:[%s2 + $0x38] sm:$0xff]
    %v57 = vld [vmem:[%s2 + $0x40] sm:$0xff]
    %v58 = vld [vmem:[%s2 + $0x48] sm:$0xff]
    %v59 = vld [vmem:[%s2 + $0x50] sm:$0xff]
    %v60 = vld [vmem:[%s2 + $0x58] sm:$0xff]
    %v61 = vld [vmem:[%s2 + $0x60] sm:$0xff]
    %v62 = vld [vmem:[%s2 + $0x68] sm:$0xff]
    %v63 = vld [vmem:[%s2 + $0x70] sm:$0xff]
    %v64 = vld [vmem:[%s2 + $0x78] sm:$0xff]
    %v65 = vld [vmem:[%s2 + $0x80] sm:$0xff]
    %v66 = vld [vmem:[%s2 + $0x88] sm:$0xff]
    %v67 = vld [vmem:[%s2 + $0x90] sm:$0xff]
    %v68 = vld [vmem:[%s2 + $0x98] sm:$0xff]
    %v69 = vld [vmem:[%s2 + $0xa0] sm:$0xff]
    %v70 = vld [vmem:[%s2 + $0xa8] sm:$0xff]
    %v71 = vld [vmem:[%s2 + $0xb0] sm:$0xff]
    %v72 = vld [vmem:[%s2 + $0xb8] sm:$0xff]
    %v73 = vld [vmem:[%s2 + $0xc0] sm:$0xff]
    %v74 = vld [vmem:[%s2 + $0xc8] sm:$0xff]
    %v75 = vld [vmem:[%s2 + $0xd0] sm:$0xff]
    %v76 = vld [vmem:[%s2 + $0xd8] sm:$0xff]
    %v77 = vld [vmem:[%s2 + $0xe0] sm:$0xff]
    %v78 = vld [vmem:[%s2 + $0xe8] sm:$0xff]
    %v79 = vld [vmem:[%s2 + $0xf0] sm:$0xff]
    %v80 = vld [vmem:[%s2 + $0xf8] sm:$0xff]
    %v81 = vld [vmem:[%s2 + $0x100] sm:$0xff]
    %v82 = vld [vmem:[%s2 + $0x108] sm:$0xff]
    %v83 = vld [vmem:[%s2 + $0x110] sm:$0xff]
    %v84 = vld [vmem:[%s2 + $0x118] sm:$0xff]
    %v85 = vld [vmem:[%s2 + $0x120] sm:$0xff]
    %v86 = vld [vmem:[%s2 + $0x128] sm:$0xff]
    %v87 = vld [vmem:[%s2 + $0x130] sm:$0xff]
    %v88 = vld [vmem:[%s2 + $0x138] sm:$0xff]
    %v89 = vld [vmem:[%s2 + $0x140] sm:$0xff]
    %v90 = vld [vmem:[%s2 + $0x148] sm:$0xff]
    %v91 = vld [vmem:[%s2 + $0x150] sm:$0xff]
    %v92 = vld [vmem:[%s2 + $0x158] sm:$0xff]
    %v93 = vld [vmem:[%s2 + $0x160] sm:$0xff]
    %v94 = vld [vmem:[%s2 + $0x168] sm:$0xff]
    %v95 = vld [vmem:[%s2 + $0x170] sm:$0xff]
    %v96 = vld [vmem:[%s2 + $0x178] sm:$0xff]
    %v97 = vld [vmem:[%s2 + $0x180] sm:$0xff]
    %v98 = vld [vmem:[%s2 + $0x188] sm:$0xff]
    %v99 = vld [vmem:[%s2 + $0x190] sm:$0xff]
    %v100 = vld [vmem:[%s2 + $0x198] sm:$0xff]
    %v101 = vld [vmem:[%s2 + $0x1a0] sm:$0xff]
    %v102 = vld [vmem:[%s2 + $0x1a8] sm:$0xff]
    %v103 = vld [vmem:[%s2 + $0x1b0] sm:$0xff]
    %v104 = vld [vmem:[%s2 + $0x1b8] sm:$0xff]
    %v105 = vld [vmem:[%s2 + $0x1c0] sm:$0xff]
    %v106 = vld [vmem:[%s2 + $0x1c8] sm:$0xff]
    %v107 = vld [vmem:[%s2 + $0x1d0] sm:$0xff]
    %v108 = vld [vmem:[%s2 + $0x1d8] sm:$0xff]
    %v109 = vld [vmem:[%s2 + $0x1e0] sm:$0xff]
    %v110 = vld [vmem:[%s2 + $0x1e8] sm:$0xff]
    %v111 = vld [vmem:[%s2 + $0x1f0] sm:$0xff]
    %v112 = vld [vmem:[%s2 + $0x1f8] sm:$0xff]
    %s113 = scalar_lea.vmem %s2, 512
    %v114 = vld [vmem:[%s113] sm:$0xff]
    %v115 = vld [vmem:[%s113 + $0x8] sm:$0xff]
    %v116 = vld [vmem:[%s113 + $0x10] sm:$0xff]
    %v117 = vld [vmem:[%s113 + $0x18] sm:$0xff]
    %v118 = vld [vmem:[%s113 + $0x20] sm:$0xff]
    %v119 = vld [vmem:[%s113 + $0x28] sm:$0xff]
    %v120 = vld [vmem:[%s113 + $0x30] sm:$0xff]
    %v121 = vld [vmem:[%s113 + $0x38] sm:$0xff]
    %v122 = vld [vmem:[%s113 + $0x40] sm:$0xff]
    %v123 = vld [vmem:[%s113 + $0x48] sm:$0xff]
    %v124 = vld [vmem:[%s113 + $0x50] sm:$0xff]
    %v125 = vld [vmem:[%s113 + $0x58] sm:$0xff]
    %v126 = vld [vmem:[%s113 + $0x60] sm:$0xff]
    %v127 = vld [vmem:[%s113 + $0x68] sm:$0xff]
    %v128 = vld [vmem:[%s113 + $0x70] sm:$0xff]
    %v129 = vld [vmem:[%s113 + $0x78] sm:$0xff]
    %v130 = vld [vmem:[%s113 + $0x80] sm:$0xff]
    %v131 = vld [vmem:[%s113 + $0x88] sm:$0xff]
    %v132 = vld [vmem:[%s113 + $0x90] sm:$0xff]
    %v133 = vld [vmem:[%s113 + $0x98] sm:$0xff]
    %v134 = vld [vmem:[%s113 + $0xa0] sm:$0xff]
    %v135 = vld [vmem:[%s113 + $0xa8] sm:$0xff]
    %v136 = vld [vmem:[%s113 + $0xb0] sm:$0xff]
    %v137 = vld [vmem:[%s113 + $0xb8] sm:$0xff]
    %v138 = vld [vmem:[%s113 + $0xc0] sm:$0xff]
    %v139 = vld [vmem:[%s113 + $0xc8] sm:$0xff]
    %v140 = vld [vmem:[%s113 + $0xd0] sm:$0xff]
    %v141 = vld [vmem:[%s113 + $0xd8] sm:$0xff]
    %v142 = vld [vmem:[%s113 + $0xe0] sm:$0xff]
    %v143 = vld [vmem:[%s113 + $0xe8] sm:$0xff]
    %v144 = vld [vmem:[%s113 + $0xf0] sm:$0xff]
    %v145 = vld [vmem:[%s113 + $0xf8] sm:$0xff]
    %v146 = vld [vmem:[%s113 + $0x100] sm:$0xff]
    %v147 = vld [vmem:[%s113 + $0x108] sm:$0xff]
    %v148 = vld [vmem:[%s113 + $0x110] sm:$0xff]
    %v149 = vld [vmem:[%s113 + $0x118] sm:$0xff]
    %v150 = vld [vmem:[%s113 + $0x120] sm:$0xff]
    %v151 = vld [vmem:[%s113 + $0x128] sm:$0xff]
    %v152 = vld [vmem:[%s113 + $0x130] sm:$0xff]
    %v153 = vld [vmem:[%s113 + $0x138] sm:$0xff]
    %v154 = vld [vmem:[%s113 + $0x140] sm:$0xff]
    %v155 = vld [vmem:[%s113 + $0x148] sm:$0xff]
    %v156 = vld [vmem:[%s113 + $0x150] sm:$0xff]
    %v157 = vld [vmem:[%s113 + $0x158] sm:$0xff]
    %v158 = vld [vmem:[%s113 + $0x160] sm:$0xff]
    %v159 = vld [vmem:[%s113 + $0x168] sm:$0xff]
    %v160 = vld [vmem:[%s113 + $0x170] sm:$0xff]
    %v161 = vld [vmem:[%s113 + $0x178] sm:$0xff]
    %v162 = vld [vmem:[%s113 + $0x180] sm:$0xff]
    %v163 = vld [vmem:[%s113 + $0x188] sm:$0xff]
    %v164 = vld [vmem:[%s113 + $0x190] sm:$0xff]
    %v165 = vld [vmem:[%s113 + $0x198] sm:$0xff]
    %v166 = vld [vmem:[%s113 + $0x1a0] sm:$0xff]
    %v167 = vld [vmem:[%s113 + $0x1a8] sm:$0xff]
    %v168 = vld [vmem:[%s113 + $0x1b0] sm:$0xff]
    %v169 = vld [vmem:[%s113 + $0x1b8] sm:$0xff]
    %v170 = vld [vmem:[%s113 + $0x1c0] sm:$0xff]
    %v171 = vld [vmem:[%s113 + $0x1c8] sm:$0xff]
    %v172 = vld [vmem:[%s113 + $0x1d0] sm:$0xff]
    %v173 = vld [vmem:[%s113 + $0x1d8] sm:$0xff]
    %v174 = vld [vmem:[%s113 + $0x1e0] sm:$0xff]
    %v175 = vld [vmem:[%s113 + $0x1e8] sm:$0xff]
    %v176 = vld [vmem:[%s113 + $0x1f0] sm:$0xff]
    %v177 = vld [vmem:[%s113 + $0x1f8] sm:$0xff]
    %vm182 = vcmask 1046528
    %v183 = vrot.slane %v45, 1
    %v184 = vrot.slane %v47, 1
    %v185 = vsel %vm182, %v183, %v184
    %v186 = vrot.slane %v46, 1
    %v187 = vrot.slane %v48, 1
    %v188 = vsel %vm182, %v186, %v187
    %193 = vmatpush.msra.mxu0 %v144
    %194 = vmatpush.msra.mxu0 %v142
    %195 = vmatpush.msra.mxu0 %v140
    %196 = vmatpush.msra.mxu0 %v138
    %197 = vmatpush.msra.mxu0 %v136
    %198 = vmatpush.msra.mxu0 %v134
    %199 = vmatpush.msra.mxu0 %v132
    %200 = vmatpush.msra.mxu0 %v130
    %201 = vmatpush.msra.mxu0 %v128
    %202 = vmatpush.msra.mxu0 %v126
    %203 = vmatpush.msra.mxu0 %v124
    %204 = vmatpush.msra.mxu0 %v122
    %205 = vmatpush.msra.mxu0 %v120
    %206 = vmatpush.msra.mxu0 %v118
    %207 = vmatpush.msra.mxu0 %v116
    %208 = vmatpush.msra.mxu0 %v114
    %209 = vmatmul.f32.gmra.mxu0 %v185
    %v210 = vpop.f32.mrf.mxu0
    %v211 = vadd.f32 0.0, %v210
    %212 = vmatmul.f32.gmra.mxu0 %v184
    %v213 = vpop.f32.mrf.mxu0
    %v214 = vadd.f32 0.0, %v213
    %215 = vdwg.mxu0
    %216 = vmatpush.msra.mxu0 %v176
    %217 = vmatpush.msra.mxu0 %v174
    %218 = vmatpush.msra.mxu0 %v172
    %219 = vmatpush.msra.mxu0 %v170
    %220 = vmatpush.msra.mxu0 %v168
    %221 = vmatpush.msra.mxu0 %v166
    %222 = vmatpush.msra.mxu0 %v164
    %223 = vmatpush.msra.mxu0 %v162
    %224 = vmatpush.msra.mxu0 %v160
    %225 = vmatpush.msra.mxu0 %v158
    %226 = vmatpush.msra.mxu0 %v156
    %227 = vmatpush.msra.mxu0 %v154
    %228 = vmatpush.msra.mxu0 %v152
    %229 = vmatpush.msra.mxu0 %v150
    %230 = vmatpush.msra.mxu0 %v148
    %231 = vmatpush.msra.mxu0 %v146
    %232 = vmatmul.f32.gmra.mxu0 %v188
    %v233 = vpop.f32.mrf.mxu0
    %v234 = vadd.f32 %v211, %v233
    %235 = vmatmul.f32.gmra.mxu0 %v187
    %v236 = vpop.f32.mrf.mxu0
    %v237 = vadd.f32 %v214, %v236
    %238 = vdwg.mxu0
    %239 = vmatpush.msra.mxu0 %v145
    %240 = vmatpush.msra.mxu0 %v143
    %241 = vmatpush.msra.mxu0 %v141
    %242 = vmatpush.msra.mxu0 %v139
    %243 = vmatpush.msra.mxu0 %v137
    %244 = vmatpush.msra.mxu0 %v135
    %245 = vmatpush.msra.mxu0 %v133
    %246 = vmatpush.msra.mxu0 %v131
    %247 = vmatpush.msra.mxu0 %v129
    %248 = vmatpush.msra.mxu0 %v127
    %249 = vmatpush.msra.mxu0 %v125
    %250 = vmatpush.msra.mxu0 %v123
    %251 = vmatpush.msra.mxu0 %v121
    %252 = vmatpush.msra.mxu0 %v119
    %253 = vmatpush.msra.mxu0 %v117
    %254 = vmatpush.msra.mxu0 %v115
    %255 = vmatmul.f32.gmra.mxu0 %v185
    %v256 = vpop.f32.mrf.mxu0
    %v257 = vadd.f32 0.0, %v256
    %258 = vmatmul.f32.gmra.mxu0 %v184
    %v259 = vpop.f32.mrf.mxu0
    %v260 = vadd.f32 0.0, %v259
    %261 = vdwg.mxu0
    %262 = vmatpush.msra.mxu0 %v177
    %263 = vmatpush.msra.mxu0 %v175
    %264 = vmatpush.msra.mxu0 %v173
    %265 = vmatpush.msra.mxu0 %v171
    %266 = vmatpush.msra.mxu0 %v169
    %267 = vmatpush.msra.mxu0 %v167
    %268 = vmatpush.msra.mxu0 %v165
    %269 = vmatpush.msra.mxu0 %v163
    %270 = vmatpush.msra.mxu0 %v161
    %271 = vmatpush.msra.mxu0 %v159
    %272 = vmatpush.msra.mxu0 %v157
    %273 = vmatpush.msra.mxu0 %v155
    %274 = vmatpush.msra.mxu0 %v153
    %275 = vmatpush.msra.mxu0 %v151
    %276 = vmatpush.msra.mxu0 %v149
    %277 = vmatpush.msra.mxu0 %v147
    %278 = vmatmul.f32.gmra.mxu0 %v188
    %v279 = vpop.f32.mrf.mxu0
    %v280 = vadd.f32 %v257, %v279
    %281 = vmatmul.f32.gmra.mxu0 %v187
    %v282 = vpop.f32.mrf.mxu0
    %v283 = vadd.f32 %v260, %v282
    %284 = vdwg.mxu0
    %285 = vmatpush.msra.mxu0 %v79
    %286 = vmatpush.msra.mxu0 %v77
    %287 = vmatpush.msra.mxu0 %v75
    %288 = vmatpush.msra.mxu0 %v73
    %289 = vmatpush.msra.mxu0 %v71
    %290 = vmatpush.msra.mxu0 %v69
    %291 = vmatpush.msra.mxu0 %v67
    %292 = vmatpush.msra.mxu0 %v65
    %293 = vmatpush.msra.mxu0 %v63
    %294 = vmatpush.msra.mxu0 %v61
    %295 = vmatpush.msra.mxu0 %v59
    %296 = vmatpush.msra.mxu0 %v57
    %297 = vmatpush.msra.mxu0 %v55
    %298 = vmatpush.msra.mxu0 %v53
    %299 = vmatpush.msra.mxu0 %v51
    %300 = vmatpush.msra.mxu0 %v49
    %301 = vmatmul.f32.gmra.mxu0 %v45
    %v302 = vpop.f32.mrf.mxu0
    %v303 = vadd.f32 %v234, %v302
    %304 = vmatmul.f32.gmra.mxu0 %v47
    %v305 = vpop.f32.mrf.mxu0
    %v306 = vadd.f32 %v237, %v305
    %307 = vdwg.mxu0
    %308 = vmatpush.msra.mxu0 %v111
    %309 = vmatpush.msra.mxu0 %v109
    %310 = vmatpush.msra.mxu0 %v107
    %311 = vmatpush.msra.mxu0 %v105
    %312 = vmatpush.msra.mxu0 %v103
    %313 = vmatpush.msra.mxu0 %v101
    %314 = vmatpush.msra.mxu0 %v99
    %315 = vmatpush.msra.mxu0 %v97
    %316 = vmatpush.msra.mxu0 %v95
    %317 = vmatpush.msra.mxu0 %v93
    %318 = vmatpush.msra.mxu0 %v91
    %319 = vmatpush.msra.mxu0 %v89
    %320 = vmatpush.msra.mxu0 %v87
    %321 = vmatpush.msra.mxu0 %v85
    %322 = vmatpush.msra.mxu0 %v83
    %323 = vmatpush.msra.mxu0 %v81
    %324 = vmatmul.f32.gmra.mxu0 %v46
    %v325 = vpop.f32.mrf.mxu0
    %v326 = vadd.f32 %v303, %v325
    %327 = vmatmul.f32.gmra.mxu0 %v48
    %v328 = vpop.f32.mrf.mxu0
    %v329 = vadd.f32 %v306, %v328
    %330 = vdwg.mxu0
    %331 = vmatpush.msra.mxu0 %v80
    %332 = vmatpush.msra.mxu0 %v78
    %333 = vmatpush.msra.mxu0 %v76
    %334 = vmatpush.msra.mxu0 %v74
    %335 = vmatpush.msra.mxu0 %v72
    %336 = vmatpush.msra.mxu0 %v70
    %337 = vmatpush.msra.mxu0 %v68
    %338 = vmatpush.msra.mxu0 %v66
    %339 = vmatpush.msra.mxu0 %v64
    %340 = vmatpush.msra.mxu0 %v62
    %341 = vmatpush.msra.mxu0 %v60
    %342 = vmatpush.msra.mxu0 %v58
    %343 = vmatpush.msra.mxu0 %v56
    %344 = vmatpush.msra.mxu0 %v54
    %345 = vmatpush.msra.mxu0 %v52
    %346 = vmatpush.msra.mxu0 %v50
    %347 = vmatmul.f32.gmra.mxu0 %v45
    %v348 = vpop.f32.mrf.mxu0
    %v349 = vadd.f32 %v280, %v348
    %350 = vmatmul.f32.gmra.mxu0 %v47
    %v351 = vpop.f32.mrf.mxu0
    %v352 = vadd.f32 %v283, %v351
    %353 = vdwg.mxu0
    %354 = vmatpush.msra.mxu0 %v112
    %355 = vmatpush.msra.mxu0 %v110
    %356 = vmatpush.msra.mxu0 %v108
    %357 = vmatpush.msra.mxu0 %v106
    %358 = vmatpush.msra.mxu0 %v104
    %359 = vmatpush.msra.mxu0 %v102
    %360 = vmatpush.msra.mxu0 %v100
    %361 = vmatpush.msra.mxu0 %v98
    %362 = vmatpush.msra.mxu0 %v96
    %363 = vmatpush.msra.mxu0 %v94
    %364 = vmatpush.msra.mxu0 %v92
    %365 = vmatpush.msra.mxu0 %v90
    %366 = vmatpush.msra.mxu0 %v88
    %367 = vmatpush.msra.mxu0 %v86
    %368 = vmatpush.msra.mxu0 %v84
    %369 = vmatpush.msra.mxu0 %v82
    %370 = vmatmul.f32.gmra.mxu0 %v46
    %v371 = vpop.f32.mrf.mxu0
    %v372 = vadd.f32 %v349, %v371
    %373 = vmatmul.f32.gmra.mxu0 %v48
    %v374 = vpop.f32.mrf.mxu0
    %v375 = vadd.f32 %v352, %v374
    %376 = vdwg.mxu0
    %s377 = scalar_lea.vmem %s2, 1024
    %v378 = vld [vmem:[%s377] sm:$0xff]
    %v379 = vld [vmem:[%s377 + $0x8] sm:$0xff]
    %v380 = vld [vmem:[%s377 + $0x10] sm:$0xff]
    %v381 = vld [vmem:[%s377 + $0x18] sm:$0xff]
    %v382 = vld [vmem:[%s377 + $0x20] sm:$0xff]
    %v383 = vld [vmem:[%s377 + $0x28] sm:$0xff]
    %v384 = vld [vmem:[%s377 + $0x30] sm:$0xff]
    %v385 = vld [vmem:[%s377 + $0x38] sm:$0xff]
    %v386 = vld [vmem:[%s377 + $0x40] sm:$0xff]
    %v387 = vld [vmem:[%s377 + $0x48] sm:$0xff]
    %v388 = vld [vmem:[%s377 + $0x50] sm:$0xff]
    %v389 = vld [vmem:[%s377 + $0x58] sm:$0xff]
    %v390 = vld [vmem:[%s377 + $0x60] sm:$0xff]
    %v391 = vld [vmem:[%s377 + $0x68] sm:$0xff]
    %v392 = vld [vmem:[%s377 + $0x70] sm:$0xff]
    %v393 = vld [vmem:[%s377 + $0x78] sm:$0xff]
    %v394 = vld [vmem:[%s377 + $0x80] sm:$0xff]
    %v395 = vld [vmem:[%s377 + $0x88] sm:$0xff]
    %v396 = vld [vmem:[%s377 + $0x90] sm:$0xff]
    %v397 = vld [vmem:[%s377 + $0x98] sm:$0xff]
    %v398 = vld [vmem:[%s377 + $0xa0] sm:$0xff]
    %v399 = vld [vmem:[%s377 + $0xa8] sm:$0xff]
    %v400 = vld [vmem:[%s377 + $0xb0] sm:$0xff]
    %v401 = vld [vmem:[%s377 + $0xb8] sm:$0xff]
    %v402 = vld [vmem:[%s377 + $0xc0] sm:$0xff]
    %v403 = vld [vmem:[%s377 + $0xc8] sm:$0xff]
    %v404 = vld [vmem:[%s377 + $0xd0] sm:$0xff]
    %v405 = vld [vmem:[%s377 + $0xd8] sm:$0xff]
    %v406 = vld [vmem:[%s377 + $0xe0] sm:$0xff]
    %v407 = vld [vmem:[%s377 + $0xe8] sm:$0xff]
    %v408 = vld [vmem:[%s377 + $0xf0] sm:$0xff]
    %v409 = vld [vmem:[%s377 + $0xf8] sm:$0xff]
    %v410 = vld [vmem:[%s377 + $0x100] sm:$0xff]
    %v411 = vld [vmem:[%s377 + $0x108] sm:$0xff]
    %v412 = vld [vmem:[%s377 + $0x110] sm:$0xff]
    %v413 = vld [vmem:[%s377 + $0x118] sm:$0xff]
    %v414 = vld [vmem:[%s377 + $0x120] sm:$0xff]
    %v415 = vld [vmem:[%s377 + $0x128] sm:$0xff]
    %v416 = vld [vmem:[%s377 + $0x130] sm:$0xff]
    %v417 = vld [vmem:[%s377 + $0x138] sm:$0xff]
    %v418 = vld [vmem:[%s377 + $0x140] sm:$0xff]
    %v419 = vld [vmem:[%s377 + $0x148] sm:$0xff]
    %v420 = vld [vmem:[%s377 + $0x150] sm:$0xff]
    %v421 = vld [vmem:[%s377 + $0x158] sm:$0xff]
    %v422 = vld [vmem:[%s377 + $0x160] sm:$0xff]
    %v423 = vld [vmem:[%s377 + $0x168] sm:$0xff]
    %v424 = vld [vmem:[%s377 + $0x170] sm:$0xff]
    %v425 = vld [vmem:[%s377 + $0x178] sm:$0xff]
    %v426 = vld [vmem:[%s377 + $0x180] sm:$0xff]
    %v427 = vld [vmem:[%s377 + $0x188] sm:$0xff]
    %v428 = vld [vmem:[%s377 + $0x190] sm:$0xff]
    %v429 = vld [vmem:[%s377 + $0x198] sm:$0xff]
    %v430 = vld [vmem:[%s377 + $0x1a0] sm:$0xff]
    %v431 = vld [vmem:[%s377 + $0x1a8] sm:$0xff]
    %v432 = vld [vmem:[%s377 + $0x1b0] sm:$0xff]
    %v433 = vld [vmem:[%s377 + $0x1b8] sm:$0xff]
    %v434 = vld [vmem:[%s377 + $0x1c0] sm:$0xff]
    %v435 = vld [vmem:[%s377 + $0x1c8] sm:$0xff]
    %v436 = vld [vmem:[%s377 + $0x1d0] sm:$0xff]
    %v437 = vld [vmem:[%s377 + $0x1d8] sm:$0xff]
    %v438 = vld [vmem:[%s377 + $0x1e0] sm:$0xff]
    %v439 = vld [vmem:[%s377 + $0x1e8] sm:$0xff]
    %v440 = vld [vmem:[%s377 + $0x1f0] sm:$0xff]
    %v441 = vld [vmem:[%s377 + $0x1f8] sm:$0xff]
    %vm442 = vcmask 1045504
    %v443 = vrot.slane %v45, 2
    %v444 = vrot.slane %v47, 2
    %v445 = vsel %vm442, %v443, %v444
    %v446 = vrot.slane %v46, 2
    %v447 = vrot.slane %v48, 2
    %v448 = vsel %vm442, %v446, %v447
    %453 = vmatpush.msra.mxu0 %v408
    %454 = vmatpush.msra.mxu0 %v406
    %455 = vmatpush.msra.mxu0 %v404
    %456 = vmatpush.msra.mxu0 %v402
    %457 = vmatpush.msra.mxu0 %v400
    %458 = vmatpush.msra.mxu0 %v398
    %459 = vmatpush.msra.mxu0 %v396
    %460 = vmatpush.msra.mxu0 %v394
    %461 = vmatpush.msra.mxu0 %v392
    %462 = vmatpush.msra.mxu0 %v390
    %463 = vmatpush.msra.mxu0 %v388
    %464 = vmatpush.msra.mxu0 %v386
    %465 = vmatpush.msra.mxu0 %v384
    %466 = vmatpush.msra.mxu0 %v382
    %467 = vmatpush.msra.mxu0 %v380
    %468 = vmatpush.msra.mxu0 %v378
    %469 = vmatmul.f32.gmra.mxu0 %v445
    %v470 = vpop.f32.mrf.mxu0
    %v471 = vadd.f32 0.0, %v470
    %472 = vmatmul.f32.gmra.mxu0 %v444
    %v473 = vpop.f32.mrf.mxu0
    %v474 = vadd.f32 0.0, %v473
    %475 = vdwg.mxu0
    %476 = vmatpush.msra.mxu0 %v440
    %477 = vmatpush.msra.mxu0 %v438
    %478 = vmatpush.msra.mxu0 %v436
    %479 = vmatpush.msra.mxu0 %v434
    %480 = vmatpush.msra.mxu0 %v432
    %481 = vmatpush.msra.mxu0 %v430
    %482 = vmatpush.msra.mxu0 %v428
    %483 = vmatpush.msra.mxu0 %v426
    %484 = vmatpush.msra.mxu0 %v424
    %485 = vmatpush.msra.mxu0 %v422
    %486 = vmatpush.msra.mxu0 %v420
    %487 = vmatpush.msra.mxu0 %v418
    %488 = vmatpush.msra.mxu0 %v416
    %489 = vmatpush.msra.mxu0 %v414
    %490 = vmatpush.msra.mxu0 %v412
    %491 = vmatpush.msra.mxu0 %v410
    %492 = vmatmul.f32.gmra.mxu0 %v448
    %v493 = vpop.f32.mrf.mxu0
    %v494 = vadd.f32 %v471, %v493
    %495 = vmatmul.f32.gmra.mxu0 %v447
    %v496 = vpop.f32.mrf.mxu0
    %v497 = vadd.f32 %v474, %v496
    %498 = vdwg.mxu0
    %499 = vmatpush.msra.mxu0 %v409
    %500 = vmatpush.msra.mxu0 %v407
    %501 = vmatpush.msra.mxu0 %v405
    %502 = vmatpush.msra.mxu0 %v403
    %503 = vmatpush.msra.mxu0 %v401
    %504 = vmatpush.msra.mxu0 %v399
    %505 = vmatpush.msra.mxu0 %v397
    %506 = vmatpush.msra.mxu0 %v395
    %507 = vmatpush.msra.mxu0 %v393
    %508 = vmatpush.msra.mxu0 %v391
    %509 = vmatpush.msra.mxu0 %v389
    %510 = vmatpush.msra.mxu0 %v387
    %511 = vmatpush.msra.mxu0 %v385
    %512 = vmatpush.msra.mxu0 %v383
    %513 = vmatpush.msra.mxu0 %v381
    %514 = vmatpush.msra.mxu0 %v379
    %515 = vmatmul.f32.gmra.mxu0 %v445
    %v516 = vpop.f32.mrf.mxu0
    %v517 = vadd.f32 0.0, %v516
    %518 = vmatmul.f32.gmra.mxu0 %v444
    %v519 = vpop.f32.mrf.mxu0
    %v520 = vadd.f32 0.0, %v519
    %521 = vdwg.mxu0
    %522 = vmatpush.msra.mxu0 %v441
    %523 = vmatpush.msra.mxu0 %v439
    %524 = vmatpush.msra.mxu0 %v437
    %525 = vmatpush.msra.mxu0 %v435
    %526 = vmatpush.msra.mxu0 %v433
    %527 = vmatpush.msra.mxu0 %v431
    %528 = vmatpush.msra.mxu0 %v429
    %529 = vmatpush.msra.mxu0 %v427
    %530 = vmatpush.msra.mxu0 %v425
    %531 = vmatpush.msra.mxu0 %v423
    %532 = vmatpush.msra.mxu0 %v421
    %533 = vmatpush.msra.mxu0 %v419
    %534 = vmatpush.msra.mxu0 %v417
    %535 = vmatpush.msra.mxu0 %v415
    %536 = vmatpush.msra.mxu0 %v413
    %537 = vmatpush.msra.mxu0 %v411
    %538 = vmatmul.f32.gmra.mxu0 %v448
    %v539 = vpop.f32.mrf.mxu0
    %v540 = vadd.f32 %v517, %v539
    %541 = vmatmul.f32.gmra.mxu0 %v447
    %v542 = vpop.f32.mrf.mxu0
    %v543 = vadd.f32 %v520, %v542
    %544 = vdwg.mxu0
    %v545 = vadd.f32 %v326, %v494
    %v546 = vadd.f32 %v372, %v540
    %v547 = vadd.f32 %v329, %v497
    %v548 = vadd.f32 %v375, %v543
    %v549 = vld [vmem:[%s3] sm:$0x3]
    %v551 = vperm.slane %v549, 0
    %v552 = vperm.slane %v549, 1
    %v555 = vadd.f32 %v545, %v551
    %v556 = vadd.f32 %v546, %v552
    %v557 = vadd.f32 %v547, %v551
    %v558 = vadd.f32 %v548, %v552
    %v559 = vmax.f32 %v555, 0.0
    %v560 = vmax.f32 %v556, 0.0
    %v561 = vmax.f32 %v557, 0.0
    %v562 = vmax.f32 %v558, 0.0
    %v565 = vrot.slane %v559, 1
    %v566 = vrot.slane %v560, 1
    %v569 = vmax.f32 %v559, %v565
    %v570 = vmax.f32 %v560, %v566
    %v573 = vrot.slane %v561, 1
    %v574 = vrot.slane %v562, 1
    %v577 = vmax.f32 %v561, %v573
    %v578 = vmax.f32 %v562, %v574
    %v581 = vrot.slane %v569, 1
    %v582 = vrot.slane %v570, 1
    %v585 = vrot.slane %v569, 2
    %v586 = vrot.slane %v570, 2
    %v589 = vrot.slane %v569, 3
    %v590 = vrot.slane %v570, 3
    %v595 = vrot.slane %v577, 4
    %v596 = vrot.slane %v578, 4
    %v599 = vrot.slane %v577, 5
    %v600 = vrot.slane %v578, 5
    %v603 = vrot.slane %v577, 6
    %v604 = vrot.slane %v578, 6
    %vm607 = vcmask 1040384
    %v608 = vsel %vm607, %v569, %v581
    %v609 = vsel %vm607, %v570, %v582
    %vm610 = vcmask 1041408
    %v611 = vsel %vm610, %v608, %v585
    %v612 = vsel %vm610, %v609, %v586
    %vm613 = vcmask 1042432
    %v614 = vsel %vm613, %v611, %v589
    %v615 = vsel %vm613, %v612, %v590
    %vm616 = vcmask 1043456
    %v617 = vsel %vm616, %v614, %v595
    %v618 = vsel %vm616, %v615, %v596
    %vm619 = vcmask 1044480
    %v620 = vsel %vm619, %v617, %v599
    %v621 = vsel %vm619, %v618, %v600
    %v622 = vsel %vm442, %v620, %v603
    %v623 = vsel %vm442, %v621, %v604
    %625 = vrot.lane.b32.xlu0 %v622, 112
    %v626 = vpop.permute.xlu0 %625
    %628 = vrot.lane.b32.xlu0 %v622, 96
    %v629 = vpop.permute.xlu0 %628
    %631 = vrot.lane.b32.xlu0 %v622, 80
    %v632 = vpop.permute.xlu0 %631
    %635 = vrot.lane.b32.xlu0 %v623, 64
    %v636 = vpop.permute.xlu0 %635
    %638 = vrot.lane.b32.xlu0 %v623, 48
    %v639 = vpop.permute.xlu0 %638
    %641 = vrot.lane.b32.xlu0 %v623, 32
    %v642 = vpop.permute.xlu0 %641
    %vm644 = vcmask 130048
    %v645 = vsel %vm644, %v622, %v626
    %vm646 = vcmask 261120
    %v647 = vsel %vm646, %v645, %v629
    %vm648 = vcmask 392192
    %v649 = vsel %vm648, %v647, %v632
    %vm650 = vcmask 523264
    %v651 = vsel %vm650, %v649, %v636
    %vm652 = vcmask 654336
    %v653 = vsel %vm652, %v651, %v639
    %vm654 = vcmask 785408
    %v655 = vsel %vm654, %v653, %v642
    %656 = vrot.lane.b32.xlu0 %v622, 64
    %v657 = vpop.permute.xlu0 %656
    %659 = vrot.lane.b32.xlu0 %v623, 16
    %v660 = vpop.permute.xlu0 %659
    %v662 = vsel %vm644, %v626, %v629
    %v663 = vsel %vm646, %v662, %v632
    %v664 = vsel %vm648, %v663, %v657
    %v665 = vsel %vm650, %v664, %v639
    %v666 = vsel %vm652, %v665, %v642
    %v667 = vsel %vm654, %v666, %v660
    %v668 = vmax.f32 %v655, %v667
    %v669 = vld [vmem:[%s4] sm:$0xff]
    %v670 = vld [vmem:[%s4 + $0x10] sm:$0xff]
    %v671 = vld [vmem:[%s4 + $0x20] sm:$0xff]
    %v672 = vld [vmem:[%s4 + $0x30] sm:$0xff]
    %v673 = vld [vmem:[%s4 + $0x40] sm:$0xff]
    %v674 = vld [vmem:[%s4 + $0x50] sm:$0xff]
    %v675 = vld [vmem:[%s4 + $0x60] sm:$0xff]
    %v676 = vld [vmem:[%s4 + $0x70] sm:$0xff]
    %v677 = vld [vmem:[%s4 + $0x80] sm:$0xff]
    %v678 = vld [vmem:[%s4 + $0x90] sm:$0xff]
    %v679 = vld [vmem:[%s4 + $0xa0] sm:$0xff]
    %v680 = vld [vmem:[%s4 + $0xb0] sm:$0xff]
    %v681 = vld [vmem:[%s4 + $0xc0] sm:$0xff]
    %v682 = vld [vmem:[%s4 + $0xd0] sm:$0xff]
    %s683 = scalar_lea.vmem %s4, 224
    %v684 = vld [vmem:[%s683] sm:$0xff]
    %v685 = vld [vmem:[%s683 + $0x10] sm:$0xff]
    %v686 = vld [vmem:[%s683 + $0x20] sm:$0xff]
    %v687 = vld [vmem:[%s683 + $0x30] sm:$0xff]
    %v688 = vld [vmem:[%s683 + $0x40] sm:$0xff]
    %v689 = vld [vmem:[%s683 + $0x50] sm:$0xff]
    %v690 = vld [vmem:[%s683 + $0x60] sm:$0xff]
    %v691 = vld [vmem:[%s683 + $0x70] sm:$0xff]
    %v692 = vld [vmem:[%s683 + $0x80] sm:$0xff]
    %v693 = vld [vmem:[%s683 + $0x90] sm:$0xff]
    %v694 = vld [vmem:[%s683 + $0xa0] sm:$0xff]
    %v695 = vld [vmem:[%s683 + $0xb0] sm:$0xff]
    %v696 = vld [vmem:[%s683 + $0xc0] sm:$0xff]
    %v697 = vld [vmem:[%s683 + $0xd0] sm:$0xff]
    %v699 = vrot.slane %v668, 1
    %vm700 = vcmask 916480
    %v701 = vsel %vm700, %v699, 0
    %703 = vmatpush.msra.mxu0 0.0
    %704 = vmatpush.msra.mxu0 0.0
    %705 = vmatpush.msra.mxu0 %v697
    %706 = vmatpush.msra.mxu0 %v696
    %707 = vmatpush.msra.mxu0 %v695
    %708 = vmatpush.msra.mxu0 %v694
    %709 = vmatpush.msra.mxu0 %v693
    %710 = vmatpush.msra.mxu0 %v692
    %711 = vmatpush.msra.mxu0 %v691
    %712 = vmatpush.msra.mxu0 %v690
    %713 = vmatpush.msra.mxu0 %v689
    %714 = vmatpush.msra.mxu0 %v688
    %715 = vmatpush.msra.mxu0 %v687
    %716 = vmatpush.msra.mxu0 %v686
    %717 = vmatpush.msra.mxu0 %v685
    %718 = vmatpush.msra.mxu0 %v684
    %719 = vmatmul.f32.gmra.mxu0 %v701
    %v720 = vpop.f32.mrf.mxu0
    %v721 = vadd.f32 0.0, %v720
    %722 = vdwg.mxu0
    %v723 = vsel %vm700, %v668, 0
    %725 = vmatpush.msra.mxu0 0.0
    %726 = vmatpush.msra.mxu0 0.0
    %727 = vmatpush.msra.mxu0 %v682
    %728 = vmatpush.msra.mxu0 %v681
    %729 = vmatpush.msra.mxu0 %v680
    %730 = vmatpush.msra.mxu0 %v679
    %731 = vmatpush.msra.mxu0 %v678
    %732 = vmatpush.msra.mxu0 %v677
    %733 = vmatpush.msra.mxu0 %v676
    %734 = vmatpush.msra.mxu0 %v675
    %735 = vmatpush.msra.mxu0 %v674
    %736 = vmatpush.msra.mxu0 %v673
    %737 = vmatpush.msra.mxu0 %v672
    %738 = vmatpush.msra.mxu0 %v671
    %739 = vmatpush.msra.mxu0 %v670
    %740 = vmatpush.msra.mxu0 %v669
    %741 = vmatmul.f32.gmra.mxu0 %v723
    %v742 = vpop.f32.mrf.mxu0
    %v743 = vadd.f32 %v721, %v742
    %744 = vdwg.mxu0
    %s745 = scalar_lea.vmem %s4, 448
    %v746 = vld [vmem:[%s745] sm:$0xff]
    %v747 = vld [vmem:[%s745 + $0x10] sm:$0xff]
    %v748 = vld [vmem:[%s745 + $0x20] sm:$0xff]
    %v749 = vld [vmem:[%s745 + $0x30] sm:$0xff]
    %v750 = vld [vmem:[%s745 + $0x40] sm:$0xff]
    %v751 = vld [vmem:[%s745 + $0x50] sm:$0xff]
    %v752 = vld [vmem:[%s745 + $0x60] sm:$0xff]
    %v753 = vld [vmem:[%s745 + $0x70] sm:$0xff]
    %v754 = vld [vmem:[%s745 + $0x80] sm:$0xff]
    %v755 = vld [vmem:[%s745 + $0x90] sm:$0xff]
    %v756 = vld [vmem:[%s745 + $0xa0] sm:$0xff]
    %v757 = vld [vmem:[%s745 + $0xb0] sm:$0xff]
    %v758 = vld [vmem:[%s745 + $0xc0] sm:$0xff]
    %v759 = vld [vmem:[%s745 + $0xd0] sm:$0xff]
    %v760 = vrot.slane %v668, 2
    %v761 = vsel %vm700, %v760, 0
    %763 = vmatpush.msra.mxu0 0.0
    %764 = vmatpush.msra.mxu0 0.0
    %765 = vmatpush.msra.mxu0 %v759
    %766 = vmatpush.msra.mxu0 %v758
    %767 = vmatpush.msra.mxu0 %v757
    %768 = vmatpush.msra.mxu0 %v756
    %769 = vmatpush.msra.mxu0 %v755
    %770 = vmatpush.msra.mxu0 %v754
    %771 = vmatpush.msra.mxu0 %v753
    %772 = vmatpush.msra.mxu0 %v752
    %773 = vmatpush.msra.mxu0 %v751
    %774 = vmatpush.msra.mxu0 %v750
    %775 = vmatpush.msra.mxu0 %v749
    %776 = vmatpush.msra.mxu0 %v748
    %777 = vmatpush.msra.mxu0 %v747
    %778 = vmatpush.msra.mxu0 %v746
    %779 = vmatmul.f32.gmra.mxu0 %v761
    %v780 = vpop.f32.mrf.mxu0
    %v781 = vadd.f32 0.0, %v780
    %782 = vdwg.mxu0
    %v783 = vadd.f32 %v743, %v781
    %v784 = vld [vmem:[%s5] sm:$0x3]
    %v786 = vperm.slane %v784, 0
    %v788 = vadd.f32 %v783, %v786
    %v789 = vmax.f32 %v788, 0.0
    %v791 = vrot.slane %v789, 1
    %v793 = vmax.f32 %v789, %v791
    %v795 = vrot.slane %v793, 1
    %v797 = vsel %vm607, %v793, %v795
    %799 = vrot.lane.b32.xlu0 %v797, 96
    %v800 = vpop.permute.xlu0 %799
    %v802 = vsel %vm646, %v797, %v800
    %803 = vrot.lane.b32.xlu0 %v797, 64
    %v804 = vpop.permute.xlu0 %803
    %v806 = vsel %vm646, %v800, %v804
    %v807 = vmax.f32 %v802, %v806
    %v809 = vrot.slane %v807, 1
    %810 = vrot.lane.b32.xlu0 %v809, 64
    %v811 = vpop.permute.xlu0 %810
    %v813 = vsel %vm650, %v807, %v811
    %s814 = scalar_lea.vmem %s0, 32
    %v815 = vld [vmem:[%s814] sm:$0xff]
    %v816 = vld [vmem:[%s814 + $0x8] sm:$0xff]
    %v817 = vld [vmem:[%s814 + $0x10] sm:$0xff]
    %v818 = vld [vmem:[%s814 + $0x18] sm:$0xff]
    %v823 = vrot.slane %v815, 1
    %v824 = vrot.slane %v817, 1
    %v825 = vsel %vm182, %v823, %v824
    %v826 = vrot.slane %v816, 1
    %v827 = vrot.slane %v818, 1
    %v828 = vsel %vm182, %v826, %v827
    %833 = vmatpush.msra.mxu0 %v144
    %834 = vmatpush.msra.mxu0 %v142
    %835 = vmatpush.msra.mxu0 %v140
    %836 = vmatpush.msra.mxu0 %v138
    %837 = vmatpush.msra.mxu0 %v136
    %838 = vmatpush.msra.mxu0 %v134
    %839 = vmatpush.msra.mxu0 %v132
    %840 = vmatpush.msra.mxu0 %v130
    %841 = vmatpush.msra.mxu0 %v128
    %842 = vmatpush.msra.mxu0 %v126
    %843 = vmatpush.msra.mxu0 %v124
    %844 = vmatpush.msra.mxu0 %v122
    %845 = vmatpush.msra.mxu0 %v120
    %846 = vmatpush.msra.mxu0 %v118
    %847 = vmatpush.msra.mxu0 %v116
    %848 = vmatpush.msra.mxu0 %v114
    %849 = vmatmul.f32.gmra.mxu0 %v825
    %v850 = vpop.f32.mrf.mxu0
    %v851 = vadd.f32 0.0, %v850
    %852 = vmatmul.f32.gmra.mxu0 %v824
    %v853 = vpop.f32.mrf.mxu0
    %v854 = vadd.f32 0.0, %v853
    %855 = vdwg.mxu0
    %856 = vmatpush.msra.mxu0 %v176
    %857 = vmatpush.msra.mxu0 %v174
    %858 = vmatpush.msra.mxu0 %v172
    %859 = vmatpush.msra.mxu0 %v170
    %860 = vmatpush.msra.mxu0 %v168
    %861 = vmatpush.msra.mxu0 %v166
    %862 = vmatpush.msra.mxu0 %v164
    %863 = vmatpush.msra.mxu0 %v162
    %864 = vmatpush.msra.mxu0 %v160
    %865 = vmatpush.msra.mxu0 %v158
    %866 = vmatpush.msra.mxu0 %v156
    %867 = vmatpush.msra.mxu0 %v154
    %868 = vmatpush.msra.mxu0 %v152
    %869 = vmatpush.msra.mxu0 %v150
    %870 = vmatpush.msra.mxu0 %v148
    %871 = vmatpush.msra.mxu0 %v146
    %872 = vmatmul.f32.gmra.mxu0 %v828
    %v873 = vpop.f32.mrf.mxu0
    %v874 = vadd.f32 %v851, %v873
    %875 = vmatmul.f32.gmra.mxu0 %v827
    %v876 = vpop.f32.mrf.mxu0
    %v877 = vadd.f32 %v854, %v876
    %878 = vdwg.mxu0
    %879 = vmatpush.msra.mxu0 %v145
    %880 = vmatpush.msra.mxu0 %v143
    %881 = vmatpush.msra.mxu0 %v141
    %882 = vmatpush.msra.mxu0 %v139
    %883 = vmatpush.msra.mxu0 %v137
    %884 = vmatpush.msra.mxu0 %v135
    %885 = vmatpush.msra.mxu0 %v133
    %886 = vmatpush.msra.mxu0 %v131
    %887 = vmatpush.msra.mxu0 %v129
    %888 = vmatpush.msra.mxu0 %v127
    %889 = vmatpush.msra.mxu0 %v125
    %890 = vmatpush.msra.mxu0 %v123
    %891 = vmatpush.msra.mxu0 %v121
    %892 = vmatpush.msra.mxu0 %v119
    %893 = vmatpush.msra.mxu0 %v117
    %894 = vmatpush.msra.mxu0 %v115
    %895 = vmatmul.f32.gmra.mxu0 %v825
    %v896 = vpop.f32.mrf.mxu0
    %v897 = vadd.f32 0.0, %v896
    %898 = vmatmul.f32.gmra.mxu0 %v824
    %v899 = vpop.f32.mrf.mxu0
    %v900 = vadd.f32 0.0, %v899
    %901 = vdwg.mxu0
    %902 = vmatpush.msra.mxu0 %v177
    %903 = vmatpush.msra.mxu0 %v175
    %904 = vmatpush.msra.mxu0 %v173
    %905 = vmatpush.msra.mxu0 %v171
    %906 = vmatpush.msra.mxu0 %v169
    %907 = vmatpush.msra.mxu0 %v167
    %908 = vmatpush.msra.mxu0 %v165
    %909 = vmatpush.msra.mxu0 %v163
    %910 = vmatpush.msra.mxu0 %v161
    %911 = vmatpush.msra.mxu0 %v159
    %912 = vmatpush.msra.mxu0 %v157
    %913 = vmatpush.msra.mxu0 %v155
    %914 = vmatpush.msra.mxu0 %v153
    %915 = vmatpush.msra.mxu0 %v151
    %916 = vmatpush.msra.mxu0 %v149
    %917 = vmatpush.msra.mxu0 %v147
    %918 = vmatmul.f32.gmra.mxu0 %v828
    %v919 = vpop.f32.mrf.mxu0
    %v920 = vadd.f32 %v897, %v919
    %921 = vmatmul.f32.gmra.mxu0 %v827
    %v922 = vpop.f32.mrf.mxu0
    %v923 = vadd.f32 %v900, %v922
    %924 = vdwg.mxu0
    %925 = vmatpush.msra.mxu0 %v79
    %926 = vmatpush.msra.mxu0 %v77
    %927 = vmatpush.msra.mxu0 %v75
    %928 = vmatpush.msra.mxu0 %v73
    %929 = vmatpush.msra.mxu0 %v71
    %930 = vmatpush.msra.mxu0 %v69
    %931 = vmatpush.msra.mxu0 %v67
    %932 = vmatpush.msra.mxu0 %v65
    %933 = vmatpush.msra.mxu0 %v63
    %934 = vmatpush.msra.mxu0 %v61
    %935 = vmatpush.msra.mxu0 %v59
    %936 = vmatpush.msra.mxu0 %v57
    %937 = vmatpush.msra.mxu0 %v55
    %938 = vmatpush.msra.mxu0 %v53
    %939 = vmatpush.msra.mxu0 %v51
    %940 = vmatpush.msra.mxu0 %v49
    %941 = vmatmul.f32.gmra.mxu0 %v815
    %v942 = vpop.f32.mrf.mxu0
    %v943 = vadd.f32 %v874, %v942
    %944 = vmatmul.f32.gmra.mxu0 %v817
    %v945 = vpop.f32.mrf.mxu0
    %v946 = vadd.f32 %v877, %v945
    %947 = vdwg.mxu0
    %948 = vmatpush.msra.mxu0 %v111
    %949 = vmatpush.msra.mxu0 %v109
    %950 = vmatpush.msra.mxu0 %v107
    %951 = vmatpush.msra.mxu0 %v105
    %952 = vmatpush.msra.mxu0 %v103
    %953 = vmatpush.msra.mxu0 %v101
    %954 = vmatpush.msra.mxu0 %v99
    %955 = vmatpush.msra.mxu0 %v97
    %956 = vmatpush.msra.mxu0 %v95
    %957 = vmatpush.msra.mxu0 %v93
    %958 = vmatpush.msra.mxu0 %v91
    %959 = vmatpush.msra.mxu0 %v89
    %960 = vmatpush.msra.mxu0 %v87
    %961 = vmatpush.msra.mxu0 %v85
    %962 = vmatpush.msra.mxu0 %v83
    %963 = vmatpush.msra.mxu0 %v81
    %964 = vmatmul.f32.gmra.mxu0 %v816
    %v965 = vpop.f32.mrf.mxu0
    %v966 = vadd.f32 %v943, %v965
    %967 = vmatmul.f32.gmra.mxu0 %v818
    %v968 = vpop.f32.mrf.mxu0
    %v969 = vadd.f32 %v946, %v968
    %970 = vdwg.mxu0
    %971 = vmatpush.msra.mxu0 %v80
    %972 = vmatpush.msra.mxu0 %v78
    %973 = vmatpush.msra.mxu0 %v76
    %974 = vmatpush.msra.mxu0 %v74
    %975 = vmatpush.msra.mxu0 %v72
    %976 = vmatpush.msra.mxu0 %v70
    %977 = vmatpush.msra.mxu0 %v68
    %978 = vmatpush.msra.mxu0 %v66
    %979 = vmatpush.msra.mxu0 %v64
    %980 = vmatpush.msra.mxu0 %v62
    %981 = vmatpush.msra.mxu0 %v60
    %982 = vmatpush.msra.mxu0 %v58
    %983 = vmatpush.msra.mxu0 %v56
    %984 = vmatpush.msra.mxu0 %v54
    %985 = vmatpush.msra.mxu0 %v52
    %986 = vmatpush.msra.mxu0 %v50
    %987 = vmatmul.f32.gmra.mxu0 %v815
    %v988 = vpop.f32.mrf.mxu0
    %v989 = vadd.f32 %v920, %v988
    %990 = vmatmul.f32.gmra.mxu0 %v817
    %v991 = vpop.f32.mrf.mxu0
    %v992 = vadd.f32 %v923, %v991
    %993 = vdwg.mxu0
    %994 = vmatpush.msra.mxu0 %v112
    %995 = vmatpush.msra.mxu0 %v110
    %996 = vmatpush.msra.mxu0 %v108
    %997 = vmatpush.msra.mxu0 %v106
    %998 = vmatpush.msra.mxu0 %v104
    %999 = vmatpush.msra.mxu0 %v102
    %1000 = vmatpush.msra.mxu0 %v100
    %1001 = vmatpush.msra.mxu0 %v98
    %1002 = vmatpush.msra.mxu0 %v96
    %1003 = vmatpush.msra.mxu0 %v94
    %1004 = vmatpush.msra.mxu0 %v92
    %1005 = vmatpush.msra.mxu0 %v90
    %1006 = vmatpush.msra.mxu0 %v88
    %1007 = vmatpush.msra.mxu0 %v86
    %1008 = vmatpush.msra.mxu0 %v84
    %1009 = vmatpush.msra.mxu0 %v82
    %1010 = vmatmul.f32.gmra.mxu0 %v816
    %v1011 = vpop.f32.mrf.mxu0
    %v1012 = vadd.f32 %v989, %v1011
    %1013 = vmatmul.f32.gmra.mxu0 %v818
    %v1014 = vpop.f32.mrf.mxu0
    %v1015 = vadd.f32 %v992, %v1014
    %1016 = vdwg.mxu0
    %v1017 = vrot.slane %v815, 2
    %v1018 = vrot.slane %v817, 2
    %v1019 = vsel %vm442, %v1017, %v1018
    %v1020 = vrot.slane %v816, 2
    %v1021 = vrot.slane %v818, 2
    %v1022 = vsel %vm442, %v1020, %v1021
    %1027 = vmatpush.msra.mxu0 %v408
    %1028 = vmatpush.msra.mxu0 %v406
    %1029 = vmatpush.msra.mxu0 %v404
    %1030 = vmatpush.msra.mxu0 %v402
    %1031 = vmatpush.msra.mxu0 %v400
    %1032 = vmatpush.msra.mxu0 %v398
    %1033 = vmatpush.msra.mxu0 %v396
    %1034 = vmatpush.msra.mxu0 %v394
    %1035 = vmatpush.msra.mxu0 %v392
    %1036 = vmatpush.msra.mxu0 %v390
    %1037 = vmatpush.msra.mxu0 %v388
    %1038 = vmatpush.msra.mxu0 %v386
    %1039 = vmatpush.msra.mxu0 %v384
    %1040 = vmatpush.msra.mxu0 %v382
    %1041 = vmatpush.msra.mxu0 %v380
    %1042 = vmatpush.msra.mxu0 %v378
    %1043 = vmatmul.f32.gmra.mxu0 %v1019
    %v1044 = vpop.f32.mrf.mxu0
    %v1045 = vadd.f32 0.0, %v1044
    %1046 = vmatmul.f32.gmra.mxu0 %v1018
    %v1047 = vpop.f32.mrf.mxu0
    %v1048 = vadd.f32 0.0, %v1047
    %1049 = vdwg.mxu0
    %1050 = vmatpush.msra.mxu0 %v440
    %1051 = vmatpush.msra.mxu0 %v438
    %1052 = vmatpush.msra.mxu0 %v436
    %1053 = vmatpush.msra.mxu0 %v434
    %1054 = vmatpush.msra.mxu0 %v432
    %1055 = vmatpush.msra.mxu0 %v430
    %1056 = vmatpush.msra.mxu0 %v428
    %1057 = vmatpush.msra.mxu0 %v426
    %1058 = vmatpush.msra.mxu0 %v424
    %1059 = vmatpush.msra.mxu0 %v422
    %1060 = vmatpush.msra.mxu0 %v420
    %1061 = vmatpush.msra.mxu0 %v418
    %1062 = vmatpush.msra.mxu0 %v416
    %1063 = vmatpush.msra.mxu0 %v414
    %1064 = vmatpush.msra.mxu0 %v412
    %1065 = vmatpush.msra.mxu0 %v410
    %1066 = vmatmul.f32.gmra.mxu0 %v1022
    %v1067 = vpop.f32.mrf.mxu0
    %v1068 = vadd.f32 %v1045, %v1067
    %1069 = vmatmul.f32.gmra.mxu0 %v1021
    %v1070 = vpop.f32.mrf.mxu0
    %v1071 = vadd.f32 %v1048, %v1070
    %1072 = vdwg.mxu0
    %1073 = vmatpush.msra.mxu0 %v409
    %1074 = vmatpush.msra.mxu0 %v407
    %1075 = vmatpush.msra.mxu0 %v405
    %1076 = vmatpush.msra.mxu0 %v403
    %1077 = vmatpush.msra.mxu0 %v401
    %1078 = vmatpush.msra.mxu0 %v399
    %1079 = vmatpush.msra.mxu0 %v397
    %1080 = vmatpush.msra.mxu0 %v395
    %1081 = vmatpush.msra.mxu0 %v393
    %1082 = vmatpush.msra.mxu0 %v391
    %1083 = vmatpush.msra.mxu0 %v389
    %1084 = vmatpush.msra.mxu0 %v387
    %1085 = vmatpush.msra.mxu0 %v385
    %1086 = vmatpush.msra.mxu0 %v383
    %1087 = vmatpush.msra.mxu0 %v381
    %1088 = vmatpush.msra.mxu0 %v379
    %1089 = vmatmul.f32.gmra.mxu0 %v1019
    %v1090 = vpop.f32.mrf.mxu0
    %v1091 = vadd.f32 0.0, %v1090
    %1092 = vmatmul.f32.gmra.mxu0 %v1018
    %v1093 = vpop.f32.mrf.mxu0
    %v1094 = vadd.f32 0.0, %v1093
    %1095 = vdwg.mxu0
    %1096 = vmatpush.msra.mxu0 %v441
    %1097 = vmatpush.msra.mxu0 %v439
    %1098 = vmatpush.msra.mxu0 %v437
    %1099 = vmatpush.msra.mxu0 %v435
    %1100 = vmatpush.msra.mxu0 %v433
    %1101 = vmatpush.msra.mxu0 %v431
    %1102 = vmatpush.msra.mxu0 %v429
    %1103 = vmatpush.msra.mxu0 %v427
    %1104 = vmatpush.msra.mxu0 %v425
    %1105 = vmatpush.msra.mxu0 %v423
    %1106 = vmatpush.msra.mxu0 %v421
    %1107 = vmatpush.msra.mxu0 %v419
    %1108 = vmatpush.msra.mxu0 %v417
    %1109 = vmatpush.msra.mxu0 %v415
    %1110 = vmatpush.msra.mxu0 %v413
    %1111 = vmatpush.msra.mxu0 %v411
    %1112 = vmatmul.f32.gmra.mxu0 %v1022
    %v1113 = vpop.f32.mrf.mxu0
    %v1114 = vadd.f32 %v1091, %v1113
    %1115 = vmatmul.f32.gmra.mxu0 %v1021
    %v1116 = vpop.f32.mrf.mxu0
    %v1117 = vadd.f32 %v1094, %v1116
    %1118 = vdwg.mxu0
    %v1119 = vadd.f32 %v966, %v1068
    %v1120 = vadd.f32 %v1012, %v1114
    %v1121 = vadd.f32 %v969, %v1071
    %v1122 = vadd.f32 %v1015, %v1117
    %v1123 = vadd.f32 %v1119, %v551
    %v1124 = vadd.f32 %v1120, %v552
    %v1125 = vadd.f32 %v1121, %v551
    %v1126 = vadd.f32 %v1122, %v552
    %v1127 = vmax.f32 %v1123, 0.0
    %v1128 = vmax.f32 %v1124, 0.0
    %v1129 = vmax.f32 %v1125, 0.0
    %v1130 = vmax.f32 %v1126, 0.0
    %v1133 = vrot.slane %v1127, 1
    %v1134 = vrot.slane %v1128, 1
    %v1137 = vmax.f32 %v1127, %v1133
    %v1138 = vmax.f32 %v1128, %v1134
    %v1141 = vrot.slane %v1129, 1
    %v1142 = vrot.slane %v1130, 1
    %v1145 = vmax.f32 %v1129, %v1141
    %v1146 = vmax.f32 %v1130, %v1142
    %v1149 = vrot.slane %v1137, 1
    %v1150 = vrot.slane %v1138, 1
    %v1153 = vrot.slane %v1137, 2
    %v1154 = vrot.slane %v1138, 2
    %v1157 = vrot.slane %v1137, 3
    %v1158 = vrot.slane %v1138, 3
    %v1163 = vrot.slane %v1145, 4
    %v1164 = vrot.slane %v1146, 4
    %v1167 = vrot.slane %v1145, 5
    %v1168 = vrot.slane %v1146, 5
    %v1171 = vrot.slane %v1145, 6
    %v1172 = vrot.slane %v1146, 6
    %v1175 = vsel %vm607, %v1137, %v1149
    %v1176 = vsel %vm607, %v1138, %v1150
    %v1177 = vsel %vm610, %v1175, %v1153
    %v1178 = vsel %vm610, %v1176, %v1154
    %v1179 = vsel %vm613, %v1177, %v1157
    %v1180 = vsel %vm613, %v1178, %v1158
    %v1181 = vsel %vm616, %v1179, %v1163
    %v1182 = vsel %vm616, %v1180, %v1164
    %v1183 = vsel %vm619, %v1181, %v1167
    %v1184 = vsel %vm619, %v1182, %v1168
    %v1185 = vsel %vm442, %v1183, %v1171
    %v1186 = vsel %vm442, %v1184, %v1172
    %1188 = vrot.lane.b32.xlu0 %v1185, 112
    %v1189 = vpop.permute.xlu0 %1188
    %1191 = vrot.lane.b32.xlu0 %v1185, 96
    %v1192 = vpop.permute.xlu0 %1191
    %1194 = vrot.lane.b32.xlu0 %v1185, 80
    %v1195 = vpop.permute.xlu0 %1194
    %1198 = vrot.lane.b32.xlu0 %v1186, 64
    %v1199 = vpop.permute.xlu0 %1198
    %1201 = vrot.lane.b32.xlu0 %v1186, 48
    %v1202 = vpop.permute.xlu0 %1201
    %1204 = vrot.lane.b32.xlu0 %v1186, 32
    %v1205 = vpop.permute.xlu0 %1204
    %v1207 = vsel %vm644, %v1185, %v1189
    %v1208 = vsel %vm646, %v1207, %v1192
    %v1209 = vsel %vm648, %v1208, %v1195
    %v1210 = vsel %vm650, %v1209, %v1199
    %v1211 = vsel %vm652, %v1210, %v1202
    %v1212 = vsel %vm654, %v1211, %v1205
    %1213 = vrot.lane.b32.xlu0 %v1185, 64
    %v1214 = vpop.permute.xlu0 %1213
    %1216 = vrot.lane.b32.xlu0 %v1186, 16
    %v1217 = vpop.permute.xlu0 %1216
    %v1219 = vsel %vm644, %v1189, %v1192
    %v1220 = vsel %vm646, %v1219, %v1195
    %v1221 = vsel %vm648, %v1220, %v1214
    %v1222 = vsel %vm650, %v1221, %v1202
    %v1223 = vsel %vm652, %v1222, %v1205
    %v1224 = vsel %vm654, %v1223, %v1217
    %v1225 = vmax.f32 %v1212, %v1224
    %v1227 = vrot.slane %v1225, 1
    %v1228 = vsel %vm700, %v1227, 0
    %1230 = vmatpush.msra.mxu0 0.0
    %1231 = vmatpush.msra.mxu0 0.0
    %1232 = vmatpush.msra.mxu0 %v697
    %1233 = vmatpush.msra.mxu0 %v696
    %1234 = vmatpush.msra.mxu0 %v695
    %1235 = vmatpush.msra.mxu0 %v694
    %1236 = vmatpush.msra.mxu0 %v693
    %1237 = vmatpush.msra.mxu0 %v692
    %1238 = vmatpush.msra.mxu0 %v691
    %1239 = vmatpush.msra.mxu0 %v690
    %1240 = vmatpush.msra.mxu0 %v689
    %1241 = vmatpush.msra.mxu0 %v688
    %1242 = vmatpush.msra.mxu0 %v687
    %1243 = vmatpush.msra.mxu0 %v686
    %1244 = vmatpush.msra.mxu0 %v685
    %1245 = vmatpush.msra.mxu0 %v684
    %1246 = vmatmul.f32.gmra.mxu0 %v1228
    %v1247 = vpop.f32.mrf.mxu0
    %v1248 = vadd.f32 0.0, %v1247
    %1249 = vdwg.mxu0
    %v1250 = vsel %vm700, %v1225, 0
    %1252 = vmatpush.msra.mxu0 0.0
    %1253 = vmatpush.msra.mxu0 0.0
    %1254 = vmatpush.msra.mxu0 %v682
    %1255 = vmatpush.msra.mxu0 %v681
    %1256 = vmatpush.msra.mxu0 %v680
    %1257 = vmatpush.msra.mxu0 %v679
    %1258 = vmatpush.msra.mxu0 %v678
    %1259 = vmatpush.msra.mxu0 %v677
    %1260 = vmatpush.msra.mxu0 %v676
    %1261 = vmatpush.msra.mxu0 %v675
    %1262 = vmatpush.msra.mxu0 %v674
    %1263 = vmatpush.msra.mxu0 %v673
    %1264 = vmatpush.msra.mxu0 %v672
    %1265 = vmatpush.msra.mxu0 %v671
    %1266 = vmatpush.msra.mxu0 %v670
    %1267 = vmatpush.msra.mxu0 %v669
    %1268 = vmatmul.f32.gmra.mxu0 %v1250
    %v1269 = vpop.f32.mrf.mxu0
    %v1270 = vadd.f32 %v1248, %v1269
    %1271 = vdwg.mxu0
    %v1272 = vrot.slane %v1225, 2
    %v1273 = vsel %vm700, %v1272, 0
    %1275 = vmatpush.msra.mxu0 0.0
    %1276 = vmatpush.msra.mxu0 0.0
    %1277 = vmatpush.msra.mxu0 %v759
    %1278 = vmatpush.msra.mxu0 %v758
    %1279 = vmatpush.msra.mxu0 %v757
    %1280 = vmatpush.msra.mxu0 %v756
    %1281 = vmatpush.msra.mxu0 %v755
    %1282 = vmatpush.msra.mxu0 %v754
    %1283 = vmatpush.msra.mxu0 %v753
    %1284 = vmatpush.msra.mxu0 %v752
    %1285 = vmatpush.msra.mxu0 %v751
    %1286 = vmatpush.msra.mxu0 %v750
    %1287 = vmatpush.msra.mxu0 %v749
    %1288 = vmatpush.msra.mxu0 %v748
    %1289 = vmatpush.msra.mxu0 %v747
    %1290 = vmatpush.msra.mxu0 %v746
    %1291 = vmatmul.f32.gmra.mxu0 %v1273
    %v1292 = vpop.f32.mrf.mxu0
    %v1293 = vadd.f32 0.0, %v1292
    %1294 = vdwg.mxu0
    %v1295 = vadd.f32 %v1270, %v1293
    %v1296 = vadd.f32 %v1295, %v786
    %v1297 = vmax.f32 %v1296, 0.0
    %v1299 = vrot.slane %v1297, 1
    %v1301 = vmax.f32 %v1297, %v1299
    %v1303 = vrot.slane %v1301, 1
    %v1305 = vsel %vm607, %v1301, %v1303
    %1307 = vrot.lane.b32.xlu0 %v1305, 96
    %v1308 = vpop.permute.xlu0 %1307
    %v1310 = vsel %vm646, %v1305, %v1308
    %1311 = vrot.lane.b32.xlu0 %v1305, 64
    %v1312 = vpop.permute.xlu0 %1311
    %v1314 = vsel %vm646, %v1308, %v1312
    %v1315 = vmax.f32 %v1310, %v1314
    %v1317 = vrot.slane %v1315, 1
    %1318 = vrot.lane.b32.xlu0 %v1317, 64
    %v1319 = vpop.permute.xlu0 %1318
    %v1321 = vsel %vm650, %v1315, %v1319
    %v1323 = vrot.slane %v1321, 7
    %v1325 = vsel %vm607, %v813, %v1323
    %v1326 = vld [vmem:[%s1] sm:$0x3]
    %v1327 = vld [vmem:[%s6] sm:$0x7]
    %v1328 = vld [vmem:[%s7] sm:$0x1]
    %v1330 = vperm.slane %v1328, 0
    %vm1332 = vcmask 23552
    %v1334 = vsel %vm1332, %v1326, 0
    %v1337 = vsel %vm613, %v1327, 0
    %1339 = vmatpush.msra.mxu0 0.0
    %1340 = vmatpush.msra.mxu0 0.0
    %1341 = vmatpush.msra.mxu0 0.0
    %1342 = vmatpush.msra.mxu0 0.0
    %1343 = vmatpush.msra.mxu0 0.0
    %1344 = vmatpush.msra.mxu0 0.0
    %1345 = vmatpush.msra.mxu0 0.0
    %1346 = vmatpush.msra.mxu0 0.0
    %1347 = vmatpush.msra.mxu0 0.0
    %1348 = vmatpush.msra.mxu0 0.0
    %1349 = vmatpush.msra.mxu0 0.0
    %1350 = vmatpush.msra.mxu0 0.0
    %1351 = vmatpush.msra.mxu0 0.0
    %1352 = vmatpush.msra.mxu0 0.0
    %1353 = vmatpush.msra.mxu0 0.0
    %1354 = vmatpush.msra.mxu0 %v1337
    %1355 = vmatmul.f32.gmra.mxu0 %v1334
    %v1356 = vpop.f32.mrf.mxu0
    %v1357 = vadd.f32 %v1330, %v1356
    %1358 = vdwg.mxu0
    %v1359 = vmax.f32 %v1357, 0.0
    %v1360 = vld [vmem:[%s8] sm:$0xff]
    %v1361 = vld [vmem:[%s8 + $0x8] sm:$0xff]
    %v1362 = vld [vmem:[%s8 + $0x10] sm:$0xff]
    %v1363 = vld [vmem:[%s8 + $0x18] sm:$0xff]
    %v1364 = vld [vmem:[%s8 + $0x20] sm:$0xff]
    %v1365 = vld [vmem:[%s8 + $0x28] sm:$0xff]
    %v1366 = vld [vmem:[%s8 + $0x30] sm:$0xff]
    %v1367 = vld [vmem:[%s8 + $0x38] sm:$0xff]
    %v1368 = vld [vmem:[%s8 + $0x40] sm:$0xff]
    %v1369 = vld [vmem:[%s8 + $0x48] sm:$0xff]
    %v1370 = vld [vmem:[%s8 + $0x50] sm:$0xff]
    %v1371 = vld [vmem:[%s8 + $0x58] sm:$0xff]
    %v1372 = vld [vmem:[%s8 + $0x60] sm:$0xff]
    %v1373 = vld [vmem:[%s8 + $0x68] sm:$0xff]
    %v1374 = vld [vmem:[%s8 + $0x70] sm:$0xff]
    %v1375 = vld [vmem:[%s8 + $0x78] sm:$0xff]
    %v1376 = vld [vmem:[%s9] sm:$0xff]
    %v1377 = vld [vmem:[%s9 + $0x8] sm:$0xff]
    %v1379 = vsel %vm644, %v1359, 0
    %1381 = vmatpush.msra.mxu0 0.0
    %1382 = vmatpush.msra.mxu0 0.0
    %1383 = vmatpush.msra.mxu0 0.0
    %1384 = vmatpush.msra.mxu0 0.0
    %1385 = vmatpush.msra.mxu0 0.0
    %1386 = vmatpush.msra.mxu0 0.0
    %1387 = vmatpush.msra.mxu0 0.0
    %1388 = vmatpush.msra.mxu0 0.0
    %1389 = vmatpush.msra.mxu0 0.0
    %1390 = vmatpush.msra.mxu0 0.0
    %1391 = vmatpush.msra.mxu0 0.0
    %1392 = vmatpush.msra.mxu0 0.0
    %1393 = vmatpush.msra.mxu0 0.0
    %1394 = vmatpush.msra.mxu0 0.0
    %1395 = vmatpush.msra.mxu0 %v1377
    %1396 = vmatpush.msra.mxu0 %v1376
    %1397 = vmatmul.f32.gmra.mxu0 %v1379
    %v1398 = vpop.f32.mrf.mxu0
    %v1399 = vadd.f32 0.0, %v1398
    %1400 = vdwg.mxu0
    %1401 = vmatpush.msra.mxu0 %v1375
    %1402 = vmatpush.msra.mxu0 %v1374
    %1403 = vmatpush.msra.mxu0 %v1373
    %1404 = vmatpush.msra.mxu0 %v1372
    %1405 = vmatpush.msra.mxu0 %v1371
    %1406 = vmatpush.msra.mxu0 %v1370
    %1407 = vmatpush.msra.mxu0 %v1369
    %1408 = vmatpush.msra.mxu0 %v1368
    %1409 = vmatpush.msra.mxu0 %v1367
    %1410 = vmatpush.msra.mxu0 %v1366
    %1411 = vmatpush.msra.mxu0 %v1365
    %1412 = vmatpush.msra.mxu0 %v1364
    %1413 = vmatpush.msra.mxu0 %v1363
    %1414 = vmatpush.msra.mxu0 %v1362
    %1415 = vmatpush.msra.mxu0 %v1361
    %1416 = vmatpush.msra.mxu0 %v1360
    %1417 = vmatmul.f32.gmra.mxu0 %v1325
    %v1418 = vpop.f32.mrf.mxu0
    %v1419 = vadd.f32 %v1399, %v1418
    %1420 = vdwg.mxu0
    %v1421 = vld [vmem:[%s10] sm:$0x1]
    %v1423 = vperm.slane %v1421, 0
    %v1425 = vadd.f32 %v1419, %v1423
    %v1426 = vmax.f32 %v1425, 0.0
    %v1427 = vld [vmem:[%s11] sm:$0xff]
    %v1428 = vld [vmem:[%s11 + $0x8] sm:$0xff]
    %v1429 = vld [vmem:[%s12] sm:$0x1]
    %v1431 = vperm.slane %v1429, 0
    %v1434 = vsel %vm644, %v1426, 0
    %1436 = vmatpush.msra.mxu0 0.0
    %1437 = vmatpush.msra.mxu0 0.0
    %1438 = vmatpush.msra.mxu0 0.0
    %1439 = vmatpush.msra.mxu0 0.0
    %1440 = vmatpush.msra.mxu0 0.0
    %1441 = vmatpush.msra.mxu0 0.0
    %1442 = vmatpush.msra.mxu0 0.0
    %1443 = vmatpush.msra.mxu0 0.0
    %1444 = vmatpush.msra.mxu0 0.0
    %1445 = vmatpush.msra.mxu0 0.0
    %1446 = vmatpush.msra.mxu0 0.0
    %1447 = vmatpush.msra.mxu0 0.0
    %1448 = vmatpush.msra.mxu0 0.0
    %1449 = vmatpush.msra.mxu0 0.0
    %1450 = vmatpush.msra.mxu0 %v1428
    %1451 = vmatpush.msra.mxu0 %v1427
    %1452 = vmatmul.f32.gmra.mxu0 %v1434
    %v1453 = vpop.f32.mrf.mxu0
    %v1454 = vadd.f32 %v1431, %v1453
    %1455 = vdwg.mxu0
    %vm1456 = vcmask 25600
    %1457 = vst.msk [vmem:[#allocation2] sm:$0x3] %vm1456, %v1454
    // Predicated region
    $region54: #{dqn_forward.1} parent=1 // pred_check
      _
    $region55: #{dqn_forward.1} parent=1 // pred_check_branch
      %1459 = sbr.rel (0) target = $region57
    $region56: #{dqn_forward.1} parent=1 // pred_region
      %1461 = vsyncadd [#allocation3], 0
      %s1463 = sshll.u32 [#allocation2], 4
      %s1464 = int_to_ptr.vmem [resolvable:$true] %s1463
      %s1465 = sshll.u32 %s13, 4
      %s1466 = int_to_ptr.hbm [resolvable:$true] %s1465
      %1468 = dma.vmem_to_hbm [thread:$0]  %s1464, 32, %s1466, [#allocation3]
    $region57: #{dqn_forward.1} parent=1 // pred_fallthru
      _
    // Predicated region
    $region58: #{dqn_forward.1} parent=1 // pred_check
      _
    $region59: #{dqn_forward.1} parent=1 // pred_check_branch
      %1470 = sbr.rel (0) target = $region61
    $region60: #{dqn_forward.1} parent=1 // pred_region
      %1472 = dma.done [#allocation3], 32
    $region61: #{dqn_forward.1} parent=1 // pred_fallthru
      _
    %1473 = vsyncpa [#allocation3], 1

</llo_original>
